<compile_context>
chip_gen: v7x
topology: tpu7x:2x2x1
jax: 0.10.0
libtpu: 0.0.40
codegen_flags: <defaults>
</compile_context>

<pallas_src>
import jax
import jax.numpy as jnp
from jax import lax
from jax.experimental import pallas as pl
from jax.experimental.pallas import tpu as pltpu

DEFAULT_FCNET_CHANNEL_LIST = [32, 64, 128, 256, 256, 128, 64, 32, 1]


def _round_up(n, m):
    return ((n + m - 1) // m) * m


def _device_kind():
    try:
        return jax.devices()[0].device_kind.lower()
    except Exception:
        return ""


def _make_fcnet_kernel(n_hidden, bf16_epilogue):
    """Kernel args: (x_ref, w1t, b1, ..., w8t, b8, w9, b9, o_ref).

    x_ref : (TILE_M, C_in)  bf16   batch on sublanes, features on lanes
    w_lt  : (in_l, out_l)   bf16   pre-transposed -> MXU-stationary operand
    b_l   : (1, out_l)      bf16 (v6e/v7x) or f32 (v5e)
    w9    : (1, c8)         bf16   final layer weights (PyTorch layout)
    b9    : (1, 1)          f32
    o_ref : (1, TILE_M)     f32    lane-dense output slab
    """
    epi = jnp.bfloat16 if bf16_epilogue else jnp.float32

    def kernel(x_ref, *refs):
        o_ref = refs[-1]
        prefs = refs[:-1]
        h = x_ref[...]                                          # (TILE_M, C_in) bf16
        for layer in range(n_hidden):
            wt = prefs[2 * layer][...]                          # (in, out) bf16, stationary
            b = prefs[2 * layer + 1][...]                       # (1, out)
            h = jnp.dot(h, wt, preferred_element_type=epi)      # stream TILE_M rows
            h = jnp.maximum(h + b, 0.0)                         # bias + ReLU in epi dtype
            if not bf16_epilogue:
                h = h.astype(jnp.bfloat16)                      # back to bf16 for next MXU op
        w9 = prefs[2 * n_hidden][...]                           # (1, c8) bf16
        b9 = prefs[2 * n_hidden + 1][...]                       # (1, 1)  f32
        # Contract h's minor (feature) axis against the single output row so the
        # result lands as a lane-dense (1, TILE_M) slab (full-width store).
        out = lax.dot_general(w9, h,
                              dimension_numbers=(((1,), (1,)), ((), ())),
                              preferred_element_type=jnp.float32)
        o_ref[...] = out + b9

    return kernel


def fcnet_forward(x, params, *, tile_m=2048):
    """x: [batch, num_input_channels] f32.
    params: list of (W:[out,in], b:[out]) f32 in PyTorch nn.Linear layout."""
    batch, in_dim = x.shape
    n_layers = len(params)
    n_hidden = n_layers - 1
    assert params[-1][0].shape[0] == 1

    kind = _device_kind()
    bf16_epilogue = ("v6" in kind) or ("v7" in kind)   # bf16 VALU available
    two_cores = "v7" in kind                           # 2 TensorCores per chip

    # Lane-align the batch tile; don't over-pad tiny batches past one tile.
    tile_m = max(128, min(_round_up(tile_m, 128), _round_up(batch, 128)))
    if two_cores and batch > 128:
        # Keep >= 2 grid steps so the "parallel" axis shards across both TCs.
        half = _round_up(-(-_round_up(batch, 128) // 2), 128)
        tile_m = min(tile_m, max(128, half))
    padded = _round_up(batch, tile_m)
    grid = (padded // tile_m,)

    epi_dtype = jnp.bfloat16 if bf16_epilogue else jnp.float32

    # Batch-major input (no transpose); pad + cast to bf16 once.
    x_p = jnp.pad(x.astype(jnp.bfloat16), ((0, padded - batch), (0, 0)))

    flat_args = [x_p]
    in_specs = [pl.BlockSpec((tile_m, in_dim), lambda i: (i, 0))]
    for li, (w, b) in enumerate(params):
        if li < n_hidden:
            wk = w.T.astype(jnp.bfloat16)               # (in, out): MXU-stationary
            bk = b.reshape(1, -1).astype(epi_dtype)     # (1, out) lane-major row
        else:
            wk = w.astype(jnp.bfloat16)                 # (1, c8) final-layer row
            bk = b.reshape(1, 1).astype(jnp.float32)    # (1, 1)
        flat_args += [wk, bk]
        # Constant index_maps -> params fetched once, stay resident in VMEM.
        in_specs += [pl.BlockSpec(wk.shape, lambda i: (0, 0)),
                     pl.BlockSpec(bk.shape, lambda i: (0, 0))]

    dims = [in_dim] + [w.shape[0] for w, _ in params]
    flops = 2 * padded * sum(dims[l] * dims[l + 1] for l in range(n_layers))
    bytes_accessed = (x_p.size * 2 + padded * 4
                      + sum(w.size * 2 + b.size * 4 for w, b in params))

    # Only needed when sweeping very large tiles (f32 slab + bf16 copy grow).
    vmem_limit = (64 * 1024 * 1024) if tile_m >= 4096 else None

    out_row = pl.pallas_call(
        _make_fcnet_kernel(n_hidden, bf16_epilogue),
        grid=grid,
        in_specs=in_specs,
        out_specs=pl.BlockSpec((1, tile_m), lambda i: (0, i)),
        out_shape=jax.ShapeDtypeStruct((1, padded), jnp.float32),
        compiler_params=pltpu.CompilerParams(
            dimension_semantics=("parallel",),      # batch tiles shard across TCs
            vmem_limit_bytes=vmem_limit),
        cost_estimate=pl.CostEstimate(flops=int(flops), transcendentals=0,
                                      bytes_accessed=int(bytes_accessed)),
    )(*flat_args)

    return out_row[0, :batch].reshape(batch, 1)


def init_params(key, num_input_channels, channel_list=DEFAULT_FCNET_CHANNEL_LIST):
    """Deterministic init mimicking nn.Linear defaults (uniform +-1/sqrt(fan_in)).
    Weights stored in PyTorch (out_features, in_features) layout."""
    dims = [num_input_channels] + list(channel_list)
    params = []
    for i in range(len(channel_list)):
        fan_in, fan_out = dims[i], dims[i + 1]
        key, kw, kb = jax.random.split(key, 3)
        bound = 1.0 / jnp.sqrt(jnp.float32(fan_in))
        w = jax.random.uniform(kw, (fan_out, fan_in), jnp.float32, -bound, bound)
        b = jax.random.uniform(kb, (fan_out,), jnp.float32, -bound, bound)
        params.append((w, b))
    return params


def fcnet_reference(x, params):
    h = x
    for i, (w, b) in enumerate(params):
        h = h @ w.T + b
        if i < len(params) - 1:
            h = jnp.maximum(h, 0.0)
    return h


if __name__ == "__main__":
    key = jax.random.PRNGKey(0)
    k_in, k_par = jax.random.split(key)

    batch = 8
    num_input_channels = 16
    x = jax.random.normal(k_in, (batch, num_input_channels), jnp.float32)
    params = init_params(k_par, num_input_channels)

    out = jax.block_until_ready(fcnet_forward(x, params))
    ref = fcnet_reference(x, params)

    assert out.shape == (batch, 1), out.shape
    # Matmuls run in bf16 (f32 accumulation; bf16 epilogue on v6e/v7x), so
    # compare against the f32 reference with a correspondingly looser tolerance.
    max_err = float(jnp.max(jnp.abs(out - ref)))
    assert jnp.allclose(out, ref, atol=3e-2, rtol=3e-2), max_err

    print("KERNEL_OK")
</pallas_src>

<mosaic_0001>
module attributes {stable_mosaic.version = 11 : i64} {
  func.func @kernel(%arg0: i32, %arg1: memref<128x16xbf16, #tpu.memory_space<vmem>>, %arg2: memref<16x32xbf16, #tpu.memory_space<vmem>>, %arg3: memref<1x32xf32, #tpu.memory_space<vmem>>, %arg4: memref<32x64xbf16, #tpu.memory_space<vmem>>, %arg5: memref<1x64xf32, #tpu.memory_space<vmem>>, %arg6: memref<64x128xbf16, #tpu.memory_space<vmem>>, %arg7: memref<1x128xf32, #tpu.memory_space<vmem>>, %arg8: memref<128x256xbf16, #tpu.memory_space<vmem>>, %arg9: memref<1x256xf32, #tpu.memory_space<vmem>>, %arg10: memref<256x256xbf16, #tpu.memory_space<vmem>>, %arg11: memref<1x256xf32, #tpu.memory_space<vmem>>, %arg12: memref<256x128xbf16, #tpu.memory_space<vmem>>, %arg13: memref<1x128xf32, #tpu.memory_space<vmem>>, %arg14: memref<128x64xbf16, #tpu.memory_space<vmem>>, %arg15: memref<1x64xf32, #tpu.memory_space<vmem>>, %arg16: memref<64x32xbf16, #tpu.memory_space<vmem>>, %arg17: memref<1x32xf32, #tpu.memory_space<vmem>>, %arg18: memref<1x32xbf16, #tpu.memory_space<vmem>>, %arg19: memref<1x1xf32, #tpu.memory_space<vmem>>, %arg20: memref<1x128xf32, #tpu.memory_space<vmem>>) attributes {dimension_semantics = [#tpu.dimension_semantics<parallel>], iteration_bounds = array<i64: 1>, scalar_prefetch = 0 : i64, scratch_operands = 0 : i64, tpu.core_type = #tpu.core_type<tc>, window_params = [{transform_indices = @transform_0, window_bounds = array<i64: 128, 16>}, {pipeline_mode = #tpu.pipeline_mode<synchronous>, transform_indices = @transform_1, window_bounds = array<i64: 16, 32>}, {pipeline_mode = #tpu.pipeline_mode<synchronous>, transform_indices = @transform_2, window_bounds = array<i64: 1, 32>}, {pipeline_mode = #tpu.pipeline_mode<synchronous>, transform_indices = @transform_3, window_bounds = array<i64: 32, 64>}, {pipeline_mode = #tpu.pipeline_mode<synchronous>, transform_indices = @transform_4, window_bounds = array<i64: 1, 64>}, {pipeline_mode = #tpu.pipeline_mode<synchronous>, transform_indices = @transform_5, window_bounds = array<i64: 64, 128>}, {pipeline_mode = #tpu.pipeline_mode<synchronous>, transform_indices = @transform_6, window_bounds = array<i64: 1, 128>}, {pipeline_mode = #tpu.pipeline_mode<synchronous>, transform_indices = @transform_7, window_bounds = array<i64: 128, 256>}, {pipeline_mode = #tpu.pipeline_mode<synchronous>, transform_indices = @transform_8, window_bounds = array<i64: 1, 256>}, {pipeline_mode = #tpu.pipeline_mode<synchronous>, transform_indices = @transform_9, window_bounds = array<i64: 256, 256>}, {pipeline_mode = #tpu.pipeline_mode<synchronous>, transform_indices = @transform_10, window_bounds = array<i64: 1, 256>}, {pipeline_mode = #tpu.pipeline_mode<synchronous>, transform_indices = @transform_11, window_bounds = array<i64: 256, 128>}, {pipeline_mode = #tpu.pipeline_mode<synchronous>, transform_indices = @transform_12, window_bounds = array<i64: 1, 128>}, {pipeline_mode = #tpu.pipeline_mode<synchronous>, transform_indices = @transform_13, window_bounds = array<i64: 128, 64>}, {pipeline_mode = #tpu.pipeline_mode<synchronous>, transform_indices = @transform_14, window_bounds = array<i64: 1, 64>}, {pipeline_mode = #tpu.pipeline_mode<synchronous>, transform_indices = @transform_15, window_bounds = array<i64: 64, 32>}, {pipeline_mode = #tpu.pipeline_mode<synchronous>, transform_indices = @transform_16, window_bounds = array<i64: 1, 32>}, {pipeline_mode = #tpu.pipeline_mode<synchronous>, transform_indices = @transform_17, window_bounds = array<i64: 1, 32>}, {pipeline_mode = #tpu.pipeline_mode<synchronous>, transform_indices = @transform_18, window_bounds = array<i64: 1, 1>}, {transform_indices = @transform_19, window_bounds = array<i64: 1, 128>}]} {
    %c0 = arith.constant 0 : index
    %c0_0 = arith.constant 0 : index
    %0 = vector.load %arg1[%c0, %c0_0] : memref<128x16xbf16, #tpu.memory_space<vmem>>, vector<128x16xbf16>
    %c0_1 = arith.constant 0 : index
    %c0_2 = arith.constant 0 : index
    %1 = vector.load %arg2[%c0_1, %c0_2] : memref<16x32xbf16, #tpu.memory_space<vmem>>, vector<16x32xbf16>
    %c0_3 = arith.constant 0 : index
    %c0_4 = arith.constant 0 : index
    %2 = vector.load %arg3[%c0_3, %c0_4] : memref<1x32xf32, #tpu.memory_space<vmem>>, vector<1x32xf32>
    %cst = arith.constant dense<0.000000e+00> : vector<128x32xf32>
    %3 = tpu.matmul %0, %1, %cst {dimension_numbers = #tpu.dot_dimension_numbers<[1], [0], [0], [1], [0, 0, 1, 1], [], []>} : vector<128x16xbf16>, vector<16x32xbf16>, vector<128x32xf32> -> vector<128x32xf32>
    %4 = vector.broadcast %2 : vector<1x32xf32> to vector<128x32xf32>
    %5 = arith.addf %3, %4 : vector<128x32xf32>
    %cst_5 = arith.constant 0.000000e+00 : f32
    %6 = vector.broadcast %cst_5 : f32 to vector<128x32xf32>
    %7 = arith.maximumf %5, %6 : vector<128x32xf32>
    %8 = arith.truncf %7 : vector<128x32xf32> to vector<128x32xbf16>
    %c0_6 = arith.constant 0 : index
    %c0_7 = arith.constant 0 : index
    %9 = vector.load %arg4[%c0_6, %c0_7] : memref<32x64xbf16, #tpu.memory_space<vmem>>, vector<32x64xbf16>
    %c0_8 = arith.constant 0 : index
    %c0_9 = arith.constant 0 : index
    %10 = vector.load %arg5[%c0_8, %c0_9] : memref<1x64xf32, #tpu.memory_space<vmem>>, vector<1x64xf32>
    %cst_10 = arith.constant dense<0.000000e+00> : vector<128x64xf32>
    %11 = tpu.matmul %8, %9, %cst_10 {dimension_numbers = #tpu.dot_dimension_numbers<[1], [0], [0], [1], [0, 0, 1, 1], [], []>} : vector<128x32xbf16>, vector<32x64xbf16>, vector<128x64xf32> -> vector<128x64xf32>
    %12 = vector.broadcast %10 : vector<1x64xf32> to vector<128x64xf32>
    %13 = arith.addf %11, %12 : vector<128x64xf32>
    %cst_11 = arith.constant 0.000000e+00 : f32
    %14 = vector.broadcast %cst_11 : f32 to vector<128x64xf32>
    %15 = arith.maximumf %13, %14 : vector<128x64xf32>
    %16 = arith.truncf %15 : vector<128x64xf32> to vector<128x64xbf16>
    %c0_12 = arith.constant 0 : index
    %c0_13 = arith.constant 0 : index
    %17 = vector.load %arg6[%c0_12, %c0_13] : memref<64x128xbf16, #tpu.memory_space<vmem>>, vector<64x128xbf16>
    %c0_14 = arith.constant 0 : index
    %c0_15 = arith.constant 0 : index
    %18 = vector.load %arg7[%c0_14, %c0_15] : memref<1x128xf32, #tpu.memory_space<vmem>>, vector<1x128xf32>
    %cst_16 = arith.constant dense<0.000000e+00> : vector<128x128xf32>
    %19 = tpu.matmul %16, %17, %cst_16 {dimension_numbers = #tpu.dot_dimension_numbers<[1], [0], [0], [1], [0, 0, 1, 1], [], []>} : vector<128x64xbf16>, vector<64x128xbf16>, vector<128x128xf32> -> vector<128x128xf32>
    %20 = vector.broadcast %18 : vector<1x128xf32> to vector<128x128xf32>
    %21 = arith.addf %19, %20 : vector<128x128xf32>
    %cst_17 = arith.constant 0.000000e+00 : f32
    %22 = vector.broadcast %cst_17 : f32 to vector<128x128xf32>
    %23 = arith.maximumf %21, %22 : vector<128x128xf32>
    %24 = arith.truncf %23 : vector<128x128xf32> to vector<128x128xbf16>
    %c0_18 = arith.constant 0 : index
    %c0_19 = arith.constant 0 : index
    %25 = vector.load %arg8[%c0_18, %c0_19] : memref<128x256xbf16, #tpu.memory_space<vmem>>, vector<128x256xbf16>
    %c0_20 = arith.constant 0 : index
    %c0_21 = arith.constant 0 : index
    %26 = vector.load %arg9[%c0_20, %c0_21] : memref<1x256xf32, #tpu.memory_space<vmem>>, vector<1x256xf32>
    %cst_22 = arith.constant dense<0.000000e+00> : vector<128x256xf32>
    %27 = tpu.matmul %24, %25, %cst_22 {dimension_numbers = #tpu.dot_dimension_numbers<[1], [0], [0], [1], [0, 0, 1, 1], [], []>} : vector<128x128xbf16>, vector<128x256xbf16>, vector<128x256xf32> -> vector<128x256xf32>
    %28 = vector.broadcast %26 : vector<1x256xf32> to vector<128x256xf32>
    %29 = arith.addf %27, %28 : vector<128x256xf32>
    %cst_23 = arith.constant 0.000000e+00 : f32
    %30 = vector.broadcast %cst_23 : f32 to vector<128x256xf32>
    %31 = arith.maximumf %29, %30 : vector<128x256xf32>
    %32 = arith.truncf %31 : vector<128x256xf32> to vector<128x256xbf16>
    %c0_24 = arith.constant 0 : index
    %c0_25 = arith.constant 0 : index
    %33 = vector.load %arg10[%c0_24, %c0_25] : memref<256x256xbf16, #tpu.memory_space<vmem>>, vector<256x256xbf16>
    %c0_26 = arith.constant 0 : index
    %c0_27 = arith.constant 0 : index
    %34 = vector.load %arg11[%c0_26, %c0_27] : memref<1x256xf32, #tpu.memory_space<vmem>>, vector<1x256xf32>
    %cst_28 = arith.constant dense<0.000000e+00> : vector<128x256xf32>
    %35 = tpu.matmul %32, %33, %cst_28 {dimension_numbers = #tpu.dot_dimension_numbers<[1], [0], [0], [1], [0, 0, 1, 1], [], []>} : vector<128x256xbf16>, vector<256x256xbf16>, vector<128x256xf32> -> vector<128x256xf32>
    %36 = vector.broadcast %34 : vector<1x256xf32> to vector<128x256xf32>
    %37 = arith.addf %35, %36 : vector<128x256xf32>
    %cst_29 = arith.constant 0.000000e+00 : f32
    %38 = vector.broadcast %cst_29 : f32 to vector<128x256xf32>
    %39 = arith.maximumf %37, %38 : vector<128x256xf32>
    %40 = arith.truncf %39 : vector<128x256xf32> to vector<128x256xbf16>
    %c0_30 = arith.constant 0 : index
    %c0_31 = arith.constant 0 : index
    %41 = vector.load %arg12[%c0_30, %c0_31] : memref<256x128xbf16, #tpu.memory_space<vmem>>, vector<256x128xbf16>
    %c0_32 = arith.constant 0 : index
    %c0_33 = arith.constant 0 : index
    %42 = vector.load %arg13[%c0_32, %c0_33] : memref<1x128xf32, #tpu.memory_space<vmem>>, vector<1x128xf32>
    %cst_34 = arith.constant dense<0.000000e+00> : vector<128x128xf32>
    %43 = tpu.matmul %40, %41, %cst_34 {dimension_numbers = #tpu.dot_dimension_numbers<[1], [0], [0], [1], [0, 0, 1, 1], [], []>} : vector<128x256xbf16>, vector<256x128xbf16>, vector<128x128xf32> -> vector<128x128xf32>
    %44 = vector.broadcast %42 : vector<1x128xf32> to vector<128x128xf32>
    %45 = arith.addf %43, %44 : vector<128x128xf32>
    %cst_35 = arith.constant 0.000000e+00 : f32
    %46 = vector.broadcast %cst_35 : f32 to vector<128x128xf32>
    %47 = arith.maximumf %45, %46 : vector<128x128xf32>
    %48 = arith.truncf %47 : vector<128x128xf32> to vector<128x128xbf16>
    %c0_36 = arith.constant 0 : index
    %c0_37 = arith.constant 0 : index
    %49 = vector.load %arg14[%c0_36, %c0_37] : memref<128x64xbf16, #tpu.memory_space<vmem>>, vector<128x64xbf16>
    %c0_38 = arith.constant 0 : index
    %c0_39 = arith.constant 0 : index
    %50 = vector.load %arg15[%c0_38, %c0_39] : memref<1x64xf32, #tpu.memory_space<vmem>>, vector<1x64xf32>
    %cst_40 = arith.constant dense<0.000000e+00> : vector<128x64xf32>
    %51 = tpu.matmul %48, %49, %cst_40 {dimension_numbers = #tpu.dot_dimension_numbers<[1], [0], [0], [1], [0, 0, 1, 1], [], []>} : vector<128x128xbf16>, vector<128x64xbf16>, vector<128x64xf32> -> vector<128x64xf32>
    %52 = vector.broadcast %50 : vector<1x64xf32> to vector<128x64xf32>
    %53 = arith.addf %51, %52 : vector<128x64xf32>
    %cst_41 = arith.constant 0.000000e+00 : f32
    %54 = vector.broadcast %cst_41 : f32 to vector<128x64xf32>
    %55 = arith.maximumf %53, %54 : vector<128x64xf32>
    %56 = arith.truncf %55 : vector<128x64xf32> to vector<128x64xbf16>
    %c0_42 = arith.constant 0 : index
    %c0_43 = arith.constant 0 : index
    %57 = vector.load %arg16[%c0_42, %c0_43] : memref<64x32xbf16, #tpu.memory_space<vmem>>, vector<64x32xbf16>
    %c0_44 = arith.constant 0 : index
    %c0_45 = arith.constant 0 : index
    %58 = vector.load %arg17[%c0_44, %c0_45] : memref<1x32xf32, #tpu.memory_space<vmem>>, vector<1x32xf32>
    %cst_46 = arith.constant dense<0.000000e+00> : vector<128x32xf32>
    %59 = tpu.matmul %56, %57, %cst_46 {dimension_numbers = #tpu.dot_dimension_numbers<[1], [0], [0], [1], [0, 0, 1, 1], [], []>} : vector<128x64xbf16>, vector<64x32xbf16>, vector<128x32xf32> -> vector<128x32xf32>
    %60 = vector.broadcast %58 : vector<1x32xf32> to vector<128x32xf32>
    %61 = arith.addf %59, %60 : vector<128x32xf32>
    %cst_47 = arith.constant 0.000000e+00 : f32
    %62 = vector.broadcast %cst_47 : f32 to vector<128x32xf32>
    %63 = arith.maximumf %61, %62 : vector<128x32xf32>
    %64 = arith.truncf %63 : vector<128x32xf32> to vector<128x32xbf16>
    %c0_48 = arith.constant 0 : index
    %c0_49 = arith.constant 0 : index
    %65 = vector.load %arg18[%c0_48, %c0_49] : memref<1x32xbf16, #tpu.memory_space<vmem>>, vector<1x32xbf16>
    %c0_50 = arith.constant 0 : index
    %c0_51 = arith.constant 0 : index
    %66 = vector.load %arg19[%c0_50, %c0_51] : memref<1x1xf32, #tpu.memory_space<vmem>>, vector<1x1xf32>
    %cst_52 = arith.constant dense<0.000000e+00> : vector<1x128xf32>
    %67 = tpu.matmul %65, %64, %cst_52 {dimension_numbers = #tpu.dot_dimension_numbers<[1], [1], [0], [0], [0, 0, 1, 0], [], []>} : vector<1x32xbf16>, vector<128x32xbf16>, vector<1x128xf32> -> vector<1x128xf32>
    %68 = vector.broadcast %66 : vector<1x1xf32> to vector<1x128xf32>
    %69 = arith.addf %67, %68 : vector<1x128xf32>
    %c0_53 = arith.constant 0 : index
    %c0_54 = arith.constant 0 : index
    %70 = vector.load %arg20[%c0_53, %c0_54] : memref<1x128xf32, #tpu.memory_space<vmem>>, vector<1x128xf32>
    tpu.vector_store %arg20[%c0_53, %c0_54], %69 {strides = array<i32>} : memref<1x128xf32, #tpu.memory_space<vmem>>, vector<1x128xf32>,
    return
  }
  func.func @transform_0(%arg0: i32) -> (i32, i32) {
    %c0_i32 = arith.constant 0 : i32
    %c0_i32_0 = arith.constant 0 : i32
    return %arg0, %c0_i32 : i32, i32
  }
  func.func @transform_1(%arg0: i32) -> (i32, i32) {
    %c0_i32 = arith.constant 0 : i32
    %c0_i32_0 = arith.constant 0 : i32
    %c0_i32_1 = arith.constant 0 : i32
    return %c0_i32, %c0_i32_0 : i32, i32
  }
  func.func @transform_2(%arg0: i32) -> (i32, i32) {
    %c0_i32 = arith.constant 0 : i32
    %c0_i32_0 = arith.constant 0 : i32
    %c0_i32_1 = arith.constant 0 : i32
    return %c0_i32, %c0_i32_0 : i32, i32
  }
  func.func @transform_3(%arg0: i32) -> (i32, i32) {
    %c0_i32 = arith.constant 0 : i32
    %c0_i32_0 = arith.constant 0 : i32
    %c0_i32_1 = arith.constant 0 : i32
    return %c0_i32, %c0_i32_0 : i32, i32
  }
  func.func @transform_4(%arg0: i32) -> (i32, i32) {
    %c0_i32 = arith.constant 0 : i32
    %c0_i32_0 = arith.constant 0 : i32
    %c0_i32_1 = arith.constant 0 : i32
    return %c0_i32, %c0_i32_0 : i32, i32
  }
  func.func @transform_5(%arg0: i32) -> (i32, i32) {
    %c0_i32 = arith.constant 0 : i32
    %c0_i32_0 = arith.constant 0 : i32
    %c0_i32_1 = arith.constant 0 : i32
    return %c0_i32, %c0_i32_0 : i32, i32
  }
  func.func @transform_6(%arg0: i32) -> (i32, i32) {
    %c0_i32 = arith.constant 0 : i32
    %c0_i32_0 = arith.constant 0 : i32
    %c0_i32_1 = arith.constant 0 : i32
    return %c0_i32, %c0_i32_0 : i32, i32
  }
  func.func @transform_7(%arg0: i32) -> (i32, i32) {
    %c0_i32 = arith.constant 0 : i32
    %c0_i32_0 = arith.constant 0 : i32
    %c0_i32_1 = arith.constant 0 : i32
    return %c0_i32, %c0_i32_0 : i32, i32
  }
  func.func @transform_8(%arg0: i32) -> (i32, i32) {
    %c0_i32 = arith.constant 0 : i32
    %c0_i32_0 = arith.constant 0 : i32
    %c0_i32_1 = arith.constant 0 : i32
    return %c0_i32, %c0_i32_0 : i32, i32
  }
  func.func @transform_9(%arg0: i32) -> (i32, i32) {
    %c0_i32 = arith.constant 0 : i32
    %c0_i32_0 = arith.constant 0 : i32
    %c0_i32_1 = arith.constant 0 : i32
    return %c0_i32, %c0_i32_0 : i32, i32
  }
  func.func @transform_10(%arg0: i32) -> (i32, i32) {
    %c0_i32 = arith.constant 0 : i32
    %c0_i32_0 = arith.constant 0 : i32
    %c0_i32_1 = arith.constant 0 : i32
    return %c0_i32, %c0_i32_0 : i32, i32
  }
  func.func @transform_11(%arg0: i32) -> (i32, i32) {
    %c0_i32 = arith.constant 0 : i32
    %c0_i32_0 = arith.constant 0 : i32
    %c0_i32_1 = arith.constant 0 : i32
    return %c0_i32, %c0_i32_0 : i32, i32
  }
  func.func @transform_12(%arg0: i32) -> (i32, i32) {
    %c0_i32 = arith.constant 0 : i32
    %c0_i32_0 = arith.constant 0 : i32
    %c0_i32_1 = arith.constant 0 : i32
    return %c0_i32, %c0_i32_0 : i32, i32
  }
  func.func @transform_13(%arg0: i32) -> (i32, i32) {
    %c0_i32 = arith.constant 0 : i32
    %c0_i32_0 = arith.constant 0 : i32
    %c0_i32_1 = arith.constant 0 : i32
    return %c0_i32, %c0_i32_0 : i32, i32
  }
  func.func @transform_14(%arg0: i32) -> (i32, i32) {
    %c0_i32 = arith.constant 0 : i32
    %c0_i32_0 = arith.constant 0 : i32
    %c0_i32_1 = arith.constant 0 : i32
    return %c0_i32, %c0_i32_0 : i32, i32
  }
  func.func @transform_15(%arg0: i32) -> (i32, i32) {
    %c0_i32 = arith.constant 0 : i32
    %c0_i32_0 = arith.constant 0 : i32
    %c0_i32_1 = arith.constant 0 : i32
    return %c0_i32, %c0_i32_0 : i32, i32
  }
  func.func @transform_16(%arg0: i32) -> (i32, i32) {
    %c0_i32 = arith.constant 0 : i32
    %c0_i32_0 = arith.constant 0 : i32
    %c0_i32_1 = arith.constant 0 : i32
    return %c0_i32, %c0_i32_0 : i32, i32
  }
  func.func @transform_17(%arg0: i32) -> (i32, i32) {
    %c0_i32 = arith.constant 0 : i32
    %c0_i32_0 = arith.constant 0 : i32
    %c0_i32_1 = arith.constant 0 : i32
    return %c0_i32, %c0_i32_0 : i32, i32
  }
  func.func @transform_18(%arg0: i32) -> (i32, i32) {
    %c0_i32 = arith.constant 0 : i32
    %c0_i32_0 = arith.constant 0 : i32
    %c0_i32_1 = arith.constant 0 : i32
    return %c0_i32, %c0_i32_0 : i32, i32
  }
  func.func @transform_19(%arg0: i32) -> (i32, i32) {
    %c0_i32 = arith.constant 0 : i32
    %c0_i32_0 = arith.constant 0 : i32
    return %c0_i32, %arg0 : i32, i32
  }
}

</mosaic_0001>

<llo_original>
// kernel: tpu_custom_call.1
$region0: #{tpu_custom_call.1}
  #allocation0 [shape = 'u32[]', space=smem, size = 0x4, offset = 0x4, fixed_abs, tag = 'smem constant byte address 0x4 - core index']
  #allocation1 [shape = 'u32[144,128]{1,0:T(1,128)}', space=vmem, size = 0x12000, scoped, tag = 'internal scratch']
  #allocation2 [shape = 'f32[1,1]{1,0:T(1,128)S(1)}', space=vmem, size = 0x200, scoped, tag = 'scoped memory for tpu_custom_call.1']
  %s0 = inlined_call_operand.vmem [shape: bf16[128,16], index: 0, kind: input, shape index: {}]
  %s1 = inlined_call_operand.hbm [shape: bf16[16,32], index: 1, kind: input, shape index: {}]
  %s2 = inlined_call_operand.hbm [shape: f32[1,32], index: 2, kind: input, shape index: {}]
  %s3 = inlined_call_operand.hbm [shape: bf16[32,64], index: 3, kind: input, shape index: {}]
  %s4 = inlined_call_operand.hbm [shape: f32[1,64], index: 4, kind: input, shape index: {}]
  %s5 = inlined_call_operand.hbm [shape: bf16[64,128], index: 5, kind: input, shape index: {}]
  %s6 = inlined_call_operand.hbm [shape: f32[1,128], index: 6, kind: input, shape index: {}]
  %s7 = inlined_call_operand.vmem [shape: bf16[128,256], index: 7, kind: input, shape index: {}]
  %s8 = inlined_call_operand.hbm [shape: f32[1,256], index: 8, kind: input, shape index: {}]
  %s9 = inlined_call_operand.hbm [shape: bf16[256,256], index: 9, kind: input, shape index: {}]
  %s10 = inlined_call_operand.hbm [shape: f32[1,256], index: 10, kind: input, shape index: {}]
  %s11 = inlined_call_operand.vmem [shape: bf16[256,128], index: 11, kind: input, shape index: {}]
  %s12 = inlined_call_operand.hbm [shape: f32[1,128], index: 12, kind: input, shape index: {}]
  %s13 = inlined_call_operand.vmem [shape: bf16[128,64], index: 13, kind: input, shape index: {}]
  %s14 = inlined_call_operand.hbm [shape: f32[1,64], index: 14, kind: input, shape index: {}]
  %s15 = inlined_call_operand.vmem [shape: bf16[64,32], index: 15, kind: input, shape index: {}]
  %s16 = inlined_call_operand.vmem [shape: f32[1,32], index: 16, kind: input, shape index: {}]
  %s17 = inlined_call_operand.vmem [shape: bf16[1,32], index: 17, kind: input, shape index: {}]
  %s18 = inlined_call_operand.<no memory space> [shape: f32[1,1], index: 18, kind: input, shape index: {}]
  %s19 = inlined_call_operand.hbm [shape: f32[1,128], index: 19, kind: output, shape index: {}]
  %s20 = sld [smem:[#allocation0]]
  $region130: #{tpu_custom_call.1} parent=0
    _
  %s22 = ssub.s32 1, %s20
  %s23 = scalar_select 0, %s22, %s20
  %v24 = vstv %s18
  %25 = vst [vmem:[#allocation2] sm:$0x1] %v24
  $region1: #{tpu_custom_call.1} parent=0
    #allocation3 [shape = 'u8[4096]{0}', space=vmem, size = 0x1000, scoped, tag = 'input window, operand 1, single buffered']
    #allocation4 [shape = 's32[1]{0}', space=sflag, size = 0x4, scoped, tag = 'scoped memory for tpu_custom_call.1']
    #allocation5 [shape = 's32[1]{0}', space=sflag, size = 0x4, scoped, tag = 'scoped memory for tpu_custom_call.1']
    #allocation6 [shape = 'u8[512]{0}', space=vmem, size = 0x400, scoped, tag = 'input window, operand 2, single buffered']
    #allocation7 [shape = 's32[1]{0}', space=sflag, size = 0x4, scoped, tag = 'scoped memory for tpu_custom_call.1']
    #allocation8 [shape = 'u8[8192]{0}', space=vmem, size = 0x2000, scoped, tag = 'input window, operand 3, single buffered']
    #allocation9 [shape = 'u8[512]{0}', space=vmem, size = 0x400, scoped, tag = 'input window, operand 4, single buffered']
    #allocation10 [shape = 's32[1]{0}', space=sflag, size = 0x4, scoped, tag = 'scoped memory for tpu_custom_call.1']
    #allocation11 [shape = 'u8[16384]{0}', space=vmem, size = 0x4000, scoped, tag = 'input window, operand 5, single buffered']
    #allocation12 [shape = 'u8[512]{0}', space=vmem, size = 0x400, scoped, tag = 'input window, operand 6, single buffered']
    #allocation13 [shape = 's32[1]{0}', space=sflag, size = 0x4, scoped, tag = 'scoped memory for tpu_custom_call.1']
    #allocation14 [shape = 'u8[1024]{0}', space=vmem, size = 0x400, scoped, tag = 'input window, operand 8, single buffered']
    #allocation15 [shape = 'u8[131072]{0}', space=vmem, size = 0x20000, scoped, tag = 'input window, operand 9, single buffered']
    #allocation16 [shape = 's32[1]{0}', space=sflag, size = 0x4, scoped, tag = 'scoped memory for tpu_custom_call.1']
    #allocation17 [shape = 'u8[1024]{0}', space=vmem, size = 0x400, scoped, tag = 'input window, operand 10, single buffered']
    #allocation18 [shape = 'u8[512]{0}', space=vmem, size = 0x400, scoped, tag = 'input window, operand 12, single buffered']
    #allocation19 [shape = 's32[1]{0}', space=sflag, size = 0x4, scoped, tag = 'scoped memory for tpu_custom_call.1']
    #allocation20 [shape = 'u8[512]{0}', space=vmem, size = 0x400, scoped, tag = 'input window, operand 14, single buffered']
    #allocation21 [shape = 'u8[512]{0}', space=vmem, size = 0x400, scoped, tag = 'output window, operand 0, single buffered']
    %26 = vsyncpa [#allocation4], 0
    %27 = vsyncpa [#allocation7], 0
    %28 = vsyncpa [#allocation10], 0
    %29 = vsyncpa [#allocation13], 0
    %30 = vsyncpa [#allocation16], 0
    %31 = vsyncpa [#allocation19], 0
    %32 = vsyncpa [#allocation5], 0
    // Predicated region
    $region2: #{tpu_custom_call.1} parent=1 // pred_check
      _
    $region3: #{tpu_custom_call.1} parent=1 // pred_check_branch
      %34 = sbr.rel (0) target = $region5
    $region4: #{tpu_custom_call.1} parent=1 // pred_region
      _
    $region5: #{tpu_custom_call.1} parent=1 // pred_fallthru
      _
    // Predicated region
    $region6: #{tpu_custom_call.1} parent=1 // pred_check
      _
    $region7: #{tpu_custom_call.1} parent=1 // pred_check_branch
      %36 = sbr.rel (0) target = $region9
    $region8: #{tpu_custom_call.1} parent=1 // pred_region
      %s38 = ssub.s32 128, 128
      %39 = vsyncadd [#allocation4], %s38
      %s40 = sshll.u32 [#allocation3], 4
      %s41 = int_to_ptr.vmem [resolvable:$true] %s40
      %46 = dma.hbm_to_vmem [thread:$0]  %s1, 128, %s41, [#allocation4], 64, 64, 4
    $region9: #{tpu_custom_call.1} parent=1 // pred_fallthru
      _
    // Predicated region
    $region10: #{tpu_custom_call.1} parent=1 // pred_check
      _
    $region11: #{tpu_custom_call.1} parent=1 // pred_check_branch
      %48 = sbr.rel (0) target = $region13
    $region12: #{tpu_custom_call.1} parent=1 // pred_region
      %s50 = ssub.s32 16, 16
      %51 = vsyncadd [#allocation7], %s50
      %s53 = sshll.u32 [#allocation6], 4
      %s54 = int_to_ptr.vmem [resolvable:$true] %s53
      %56 = dma.hbm_to_vmem [thread:$0]  %s2, 16, %s54, [#allocation7]
    $region13: #{tpu_custom_call.1} parent=1 // pred_fallthru
      _
    // Predicated region
    $region14: #{tpu_custom_call.1} parent=1 // pred_check
      _
    $region15: #{tpu_custom_call.1} parent=1 // pred_check_branch
      %58 = sbr.rel (0) target = $region17
    $region16: #{tpu_custom_call.1} parent=1 // pred_region
      %s60 = ssub.s32 256, 256
      %61 = vsyncadd [#allocation7], %s60
      %s62 = sshll.u32 [#allocation8], 4
      %s63 = int_to_ptr.vmem [resolvable:$true] %s62
      %68 = dma.hbm_to_vmem [thread:$0]  %s3, 256, %s63, [#allocation7], 64, 64, 4
    $region17: #{tpu_custom_call.1} parent=1 // pred_fallthru
      _
    // Predicated region
    $region18: #{tpu_custom_call.1} parent=1 // pred_check
      _
    $region19: #{tpu_custom_call.1} parent=1 // pred_check_branch
      %70 = sbr.rel (0) target = $region21
    $region20: #{tpu_custom_call.1} parent=1 // pred_region
      %s72 = ssub.s32 16, 16
      %73 = vsyncadd [#allocation10], %s72
      %s75 = sshll.u32 [#allocation9], 4
      %s76 = int_to_ptr.vmem [resolvable:$true] %s75
      %78 = dma.hbm_to_vmem [thread:$0]  %s4, 16, %s76, [#allocation10]
    $region21: #{tpu_custom_call.1} parent=1 // pred_fallthru
      _
    // Predicated region
    $region22: #{tpu_custom_call.1} parent=1 // pred_check
      _
    $region23: #{tpu_custom_call.1} parent=1 // pred_check_branch
      %80 = sbr.rel (0) target = $region25
    $region24: #{tpu_custom_call.1} parent=1 // pred_region
      %s82 = ssub.s32 512, 512
      %83 = vsyncadd [#allocation10], %s82
      %s84 = sshll.u32 [#allocation11], 4
      %s85 = int_to_ptr.vmem [resolvable:$true] %s84
      %90 = dma.hbm_to_vmem [thread:$0]  %s5, 512, %s85, [#allocation10], 64, 64, 4
    $region25: #{tpu_custom_call.1} parent=1 // pred_fallthru
      _
    // Predicated region
    $region26: #{tpu_custom_call.1} parent=1 // pred_check
      _
    $region27: #{tpu_custom_call.1} parent=1 // pred_check_branch
      %92 = sbr.rel (0) target = $region29
    $region28: #{tpu_custom_call.1} parent=1 // pred_region
      %s94 = ssub.s32 16, 16
      %95 = vsyncadd [#allocation13], %s94
      %s97 = sshll.u32 [#allocation12], 4
      %s98 = int_to_ptr.vmem [resolvable:$true] %s97
      %100 = dma.hbm_to_vmem [thread:$0]  %s6, 16, %s98, [#allocation13]
    $region29: #{tpu_custom_call.1} parent=1 // pred_fallthru
      _
    // Predicated region
    $region30: #{tpu_custom_call.1} parent=1 // pred_check
      _
    $region31: #{tpu_custom_call.1} parent=1 // pred_check_branch
      %102 = sbr.rel (0) target = $region33
    $region32: #{tpu_custom_call.1} parent=1 // pred_region
      _
    $region33: #{tpu_custom_call.1} parent=1 // pred_fallthru
      _
    // Predicated region
    $region34: #{tpu_custom_call.1} parent=1 // pred_check
      _
    $region35: #{tpu_custom_call.1} parent=1 // pred_check_branch
      %104 = sbr.rel (0) target = $region37
    $region36: #{tpu_custom_call.1} parent=1 // pred_region
      %s106 = ssub.s32 32, 32
      %107 = vsyncadd [#allocation13], %s106
      %s109 = sshll.u32 [#allocation14], 4
      %s110 = int_to_ptr.vmem [resolvable:$true] %s109
      %112 = dma.hbm_to_vmem [thread:$0]  %s8, 32, %s110, [#allocation13]
    $region37: #{tpu_custom_call.1} parent=1 // pred_fallthru
      _
    // Predicated region
    $region38: #{tpu_custom_call.1} parent=1 // pred_check
      _
    $region39: #{tpu_custom_call.1} parent=1 // pred_check_branch
      %114 = sbr.rel (0) target = $region41
    $region40: #{tpu_custom_call.1} parent=1 // pred_region
      %s116 = ssub.s32 4096, 4096
      %117 = vsyncadd [#allocation16], %s116
      %s118 = sshll.u32 [#allocation15], 4
      %s119 = int_to_ptr.vmem [resolvable:$true] %s118
      %124 = dma.hbm_to_vmem [thread:$0]  %s9, 4096, %s119, [#allocation16], 128, 128, 8
    $region41: #{tpu_custom_call.1} parent=1 // pred_fallthru
      _
    // Predicated region
    $region42: #{tpu_custom_call.1} parent=1 // pred_check
      _
    $region43: #{tpu_custom_call.1} parent=1 // pred_check_branch
      %126 = sbr.rel (0) target = $region45
    $region44: #{tpu_custom_call.1} parent=1 // pred_region
      %s128 = ssub.s32 32, 32
      %129 = vsyncadd [#allocation16], %s128
      %s131 = sshll.u32 [#allocation17], 4
      %s132 = int_to_ptr.vmem [resolvable:$true] %s131
      %134 = dma.hbm_to_vmem [thread:$0]  %s10, 32, %s132, [#allocation16]
    $region45: #{tpu_custom_call.1} parent=1 // pred_fallthru
      _
    // Predicated region
    $region46: #{tpu_custom_call.1} parent=1 // pred_check
      _
    $region47: #{tpu_custom_call.1} parent=1 // pred_check_branch
      %136 = sbr.rel (0) target = $region49
    $region48: #{tpu_custom_call.1} parent=1 // pred_region
      _
    $region49: #{tpu_custom_call.1} parent=1 // pred_fallthru
      _
    // Predicated region
    $region50: #{tpu_custom_call.1} parent=1 // pred_check
      _
    $region51: #{tpu_custom_call.1} parent=1 // pred_check_branch
      %138 = sbr.rel (0) target = $region53
    $region52: #{tpu_custom_call.1} parent=1 // pred_region
      %s140 = ssub.s32 16, 16
      %141 = vsyncadd [#allocation19], %s140
      %s143 = sshll.u32 [#allocation18], 4
      %s144 = int_to_ptr.vmem [resolvable:$true] %s143
      %146 = dma.hbm_to_vmem [thread:$0]  %s12, 16, %s144, [#allocation19]
    $region53: #{tpu_custom_call.1} parent=1 // pred_fallthru
      _
    // Predicated region
    $region54: #{tpu_custom_call.1} parent=1 // pred_check
      _
    $region55: #{tpu_custom_call.1} parent=1 // pred_check_branch
      %148 = sbr.rel (0) target = $region57
    $region56: #{tpu_custom_call.1} parent=1 // pred_region
      _
    $region57: #{tpu_custom_call.1} parent=1 // pred_fallthru
      _
    // Predicated region
    $region58: #{tpu_custom_call.1} parent=1 // pred_check
      _
    $region59: #{tpu_custom_call.1} parent=1 // pred_check_branch
      %150 = sbr.rel (0) target = $region61
    $region60: #{tpu_custom_call.1} parent=1 // pred_region
      %s152 = ssub.s32 16, 16
      %153 = vsyncadd [#allocation19], %s152
      %s155 = sshll.u32 [#allocation20], 4
      %s156 = int_to_ptr.vmem [resolvable:$true] %s155
      %158 = dma.hbm_to_vmem [thread:$0]  %s14, 16, %s156, [#allocation19]
    $region61: #{tpu_custom_call.1} parent=1 // pred_fallthru
      _
    // Predicated region
    $region62: #{tpu_custom_call.1} parent=1 // pred_check
      _
    $region63: #{tpu_custom_call.1} parent=1 // pred_check_branch
      %160 = sbr.rel (0) target = $region65
    $region64: #{tpu_custom_call.1} parent=1 // pred_region
      _
    $region65: #{tpu_custom_call.1} parent=1 // pred_fallthru
      _
    // Predicated region
    $region66: #{tpu_custom_call.1} parent=1 // pred_check
      _
    $region67: #{tpu_custom_call.1} parent=1 // pred_check_branch
      %162 = sbr.rel (0) target = $region69
    $region68: #{tpu_custom_call.1} parent=1 // pred_region
      _
    $region69: #{tpu_custom_call.1} parent=1 // pred_fallthru
      _
    // Predicated region
    $region70: #{tpu_custom_call.1} parent=1 // pred_check
      _
    $region71: #{tpu_custom_call.1} parent=1 // pred_check_branch
      %164 = sbr.rel (0) target = $region73
    $region72: #{tpu_custom_call.1} parent=1 // pred_region
      _
    $region73: #{tpu_custom_call.1} parent=1 // pred_fallthru
      _
    // Predicated region
    $region74: #{tpu_custom_call.1} parent=1 // pred_check
      _
    $region75: #{tpu_custom_call.1} parent=1 // pred_check_branch
      %166 = sbr.rel (0) target = $region77
    $region76: #{tpu_custom_call.1} parent=1 // pred_region
      _
    $region77: #{tpu_custom_call.1} parent=1 // pred_fallthru
      _
    // Predicated region
    $region78: #{tpu_custom_call.1} parent=1 // pred_check
      _
    $region79: #{tpu_custom_call.1} parent=1 // pred_check_branch
      %168 = sbr.rel (0) target = $region81
    $region80: #{tpu_custom_call.1} parent=1 // pred_region
      %169 = dma.done [#allocation4], 128
    $region81: #{tpu_custom_call.1} parent=1 // pred_fallthru
      _
    // Predicated region
    $region82: #{tpu_custom_call.1} parent=1 // pred_check
      _
    $region83: #{tpu_custom_call.1} parent=1 // pred_check_branch
      %171 = sbr.rel (0) target = $region85
    $region84: #{tpu_custom_call.1} parent=1 // pred_region
      %172 = dma.done [#allocation7], 16
    $region85: #{tpu_custom_call.1} parent=1 // pred_fallthru
      _
    // Predicated region
    $region86: #{tpu_custom_call.1} parent=1 // pred_check
      _
    $region87: #{tpu_custom_call.1} parent=1 // pred_check_branch
      %174 = sbr.rel (0) target = $region89
    $region88: #{tpu_custom_call.1} parent=1 // pred_region
      %175 = dma.done [#allocation7], 256
    $region89: #{tpu_custom_call.1} parent=1 // pred_fallthru
      _
    // Predicated region
    $region90: #{tpu_custom_call.1} parent=1 // pred_check
      _
    $region91: #{tpu_custom_call.1} parent=1 // pred_check_branch
      %177 = sbr.rel (0) target = $region93
    $region92: #{tpu_custom_call.1} parent=1 // pred_region
      %178 = dma.done [#allocation10], 16
    $region93: #{tpu_custom_call.1} parent=1 // pred_fallthru
      _
    // Predicated region
    $region94: #{tpu_custom_call.1} parent=1 // pred_check
      _
    $region95: #{tpu_custom_call.1} parent=1 // pred_check_branch
      %180 = sbr.rel (0) target = $region97
    $region96: #{tpu_custom_call.1} parent=1 // pred_region
      %181 = dma.done [#allocation10], 512
    $region97: #{tpu_custom_call.1} parent=1 // pred_fallthru
      _
    // Predicated region
    $region98: #{tpu_custom_call.1} parent=1 // pred_check
      _
    $region99: #{tpu_custom_call.1} parent=1 // pred_check_branch
      %183 = sbr.rel (0) target = $region101
    $region100: #{tpu_custom_call.1} parent=1 // pred_region
      %184 = dma.done [#allocation13], 16
    $region101: #{tpu_custom_call.1} parent=1 // pred_fallthru
      _
    // Predicated region
    $region102: #{tpu_custom_call.1} parent=1 // pred_check
      _
    $region103: #{tpu_custom_call.1} parent=1 // pred_check_branch
      %186 = sbr.rel (0) target = $region105
    $region104: #{tpu_custom_call.1} parent=1 // pred_region
      %187 = dma.done [#allocation13], 32
    $region105: #{tpu_custom_call.1} parent=1 // pred_fallthru
      _
    // Predicated region
    $region106: #{tpu_custom_call.1} parent=1 // pred_check
      _
    $region107: #{tpu_custom_call.1} parent=1 // pred_check_branch
      %189 = sbr.rel (0) target = $region109
    $region108: #{tpu_custom_call.1} parent=1 // pred_region
      %190 = dma.done [#allocation16], 4096
    $region109: #{tpu_custom_call.1} parent=1 // pred_fallthru
      _
    // Predicated region
    $region110: #{tpu_custom_call.1} parent=1 // pred_check
      _
    $region111: #{tpu_custom_call.1} parent=1 // pred_check_branch
      %192 = sbr.rel (0) target = $region113
    $region112: #{tpu_custom_call.1} parent=1 // pred_region
      %193 = dma.done [#allocation16], 32
    $region113: #{tpu_custom_call.1} parent=1 // pred_fallthru
      _
    // Predicated region
    $region114: #{tpu_custom_call.1} parent=1 // pred_check
      _
    $region115: #{tpu_custom_call.1} parent=1 // pred_check_branch
      %195 = sbr.rel (0) target = $region117
    $region116: #{tpu_custom_call.1} parent=1 // pred_region
      %196 = dma.done [#allocation19], 16
    $region117: #{tpu_custom_call.1} parent=1 // pred_fallthru
      _
    // Predicated region
    $region118: #{tpu_custom_call.1} parent=1 // pred_check
      _
    $region119: #{tpu_custom_call.1} parent=1 // pred_check_branch
      %198 = sbr.rel (0) target = $region121
    $region120: #{tpu_custom_call.1} parent=1 // pred_region
      %199 = dma.done [#allocation19], 16
    $region121: #{tpu_custom_call.1} parent=1 // pred_fallthru
      _
    %v201 = vld [vmem:[%s0] sm:$0xf]
    %v202 = vld [vmem:[%s0 + $0x4] sm:$0xf]
    %v203 = vld [vmem:[%s0 + $0x8] sm:$0xf]
    %v204 = vld [vmem:[%s0 + $0xc] sm:$0xf]
    %v205 = vld [vmem:[%s0 + $0x10] sm:$0xf]
    %v206 = vld [vmem:[%s0 + $0x14] sm:$0xf]
    %v207 = vld [vmem:[%s0 + $0x18] sm:$0xf]
    %v208 = vld [vmem:[%s0 + $0x1c] sm:$0xf]
    %v209 = vld [vmem:[%s0 + $0x20] sm:$0xf]
    %v210 = vld [vmem:[%s0 + $0x24] sm:$0xf]
    %v211 = vld [vmem:[%s0 + $0x28] sm:$0xf]
    %v212 = vld [vmem:[%s0 + $0x2c] sm:$0xf]
    %v213 = vld [vmem:[%s0 + $0x30] sm:$0xf]
    %v214 = vld [vmem:[%s0 + $0x34] sm:$0xf]
    %v215 = vld [vmem:[%s0 + $0x38] sm:$0xf]
    %v216 = vld [vmem:[%s0 + $0x3c] sm:$0xf]
    %v217 = vld [vmem:[#allocation3] sm:$0xf]
    %v218 = vld [vmem:[#allocation3 + $0x4] sm:$0xf]
    %v219 = vld [vmem:[#allocation6] sm:$0x1]
    %v221 = vlaneseq
    %v222 = vshrl.u32 %v221, 7
    %v223 = vsub.s32 0, %v222
    %v224 = vrot.slane %v219, %v223
    %v242 = vunpack.c.l.b16 %v201
    %v243 = vunpack.c.l.b16 %v202
    %v244 = vunpack.c.l.b16 %v203
    %v245 = vunpack.c.l.b16 %v204
    %v246 = vunpack.c.l.b16 %v205
    %v247 = vunpack.c.l.b16 %v206
    %v248 = vunpack.c.l.b16 %v207
    %v249 = vunpack.c.l.b16 %v208
    %v250 = vunpack.c.l.b16 %v209
    %v251 = vunpack.c.l.b16 %v210
    %v252 = vunpack.c.l.b16 %v211
    %v253 = vunpack.c.l.b16 %v212
    %v254 = vunpack.c.l.b16 %v213
    %v255 = vunpack.c.l.b16 %v214
    %v256 = vunpack.c.l.b16 %v215
    %v257 = vunpack.c.l.b16 %v216
    %v258 = vpack.c.b16 %v243, %v242
    %v259 = vpack.c.b16 %v245, %v244
    %v260 = vpack.c.b16 %v247, %v246
    %v261 = vpack.c.b16 %v249, %v248
    %v262 = vpack.c.b16 %v251, %v250
    %v263 = vpack.c.b16 %v253, %v252
    %v264 = vpack.c.b16 %v255, %v254
    %v265 = vpack.c.b16 %v257, %v256
    %v268 = vunpack.c.l.b16 %v217
    %v269 = vunpack.c.l.b16 %v218
    %v270 = vpack.c.b16 %v269, %v268
    %vm272 = vcmask 130048
    %v274 = vsel %vm272, %v258, 0
    %v277 = vsel %vm272, %v259, 0
    %v280 = vsel %vm272, %v260, 0
    %v283 = vsel %vm272, %v261, 0
    %v286 = vsel %vm272, %v262, 0
    %v289 = vsel %vm272, %v263, 0
    %v292 = vsel %vm272, %v264, 0
    %v295 = vsel %vm272, %v265, 0
    %297 = vmatprep.subr.bf16.mxu0 0
    %298 = vmatpush1.bf16.msra.mxu0 %v270
    %299 = vmatprep.subr.bf16.mxu0 0
    %300 = vmatpush1.bf16.msra.mxu0 0
    %301 = vmatprep.subr.bf16.mxu0 0
    %302 = vmatpush1.bf16.msra.mxu0 0
    %303 = vmatprep.subr.bf16.mxu0 0
    %304 = vmatpush1.bf16.msra.mxu0 0
    %305 = vmatprep.subr.bf16.mxu0 0
    %306 = vmatpush1.bf16.msra.mxu0 0
    %307 = vmatprep.subr.bf16.mxu0 0
    %308 = vmatpush1.bf16.msra.mxu0 0
    %309 = vmatprep.subr.bf16.mxu0 0
    %310 = vmatpush1.bf16.msra.mxu0 0
    %311 = vmatprep.subr.bf16.mxu0 0
    %312 = vmatpush1.bf16.msra.mxu0 0
    %313 = vmatprep.subr.bf16.mxu0 0
    %314 = vmatpush1.bf16.msra.mxu0 0
    %315 = vmatprep.subr.bf16.mxu0 0
    %316 = vmatpush1.bf16.msra.mxu0 0
    %317 = vmatprep.subr.bf16.mxu0 0
    %318 = vmatpush1.bf16.msra.mxu0 0
    %319 = vmatprep.subr.bf16.mxu0 0
    %320 = vmatpush1.bf16.msra.mxu0 0
    %321 = vmatprep.subr.bf16.mxu0 0
    %322 = vmatpush1.bf16.msra.mxu0 0
    %323 = vmatprep.subr.bf16.mxu0 0
    %324 = vmatpush1.bf16.msra.mxu0 0
    %325 = vmatprep.subr.bf16.mxu0 0
    %326 = vmatpush1.bf16.msra.mxu0 0
    %327 = vmatprep.subr.bf16.mxu0 0
    %328 = vmatpush1.bf16.msra.mxu0 0
    %329 = vmatprep.mubr.bf16.mxu0 0
    %330 = vmatmul.mubr.bf16.gmra.mrb[0].mxu0 %v274
    %v331 = vpop.f32.mrb[0].mxu0
    %v332 = vadd.f32 %v224, %v331
    %v333 = vpop.f32.mrb[0].mxu0
    %v334 = vpop.f32.mrb[0].mxu0
    %v335 = vadd.f32 %v224, %v334
    %v336 = vpop.f32.mrb[0].mxu0
    %337 = vmatprep.mubr.bf16.mxu0 0
    %338 = vmatmul.mubr.bf16.gmra.mrb[0].mxu0 %v277
    %v339 = vpop.f32.mrb[0].mxu0
    %v340 = vadd.f32 %v224, %v339
    %v341 = vpop.f32.mrb[0].mxu0
    %v342 = vpop.f32.mrb[0].mxu0
    %v343 = vadd.f32 %v224, %v342
    %v344 = vpop.f32.mrb[0].mxu0
    %345 = vmatprep.mubr.bf16.mxu0 0
    %346 = vmatmul.mubr.bf16.gmra.mrb[0].mxu0 %v280
    %v347 = vpop.f32.mrb[0].mxu0
    %v348 = vadd.f32 %v224, %v347
    %v349 = vpop.f32.mrb[0].mxu0
    %v350 = vpop.f32.mrb[0].mxu0
    %v351 = vadd.f32 %v224, %v350
    %v352 = vpop.f32.mrb[0].mxu0
    %353 = vmatprep.mubr.bf16.mxu0 0
    %354 = vmatmul.mubr.bf16.gmra.mrb[0].mxu0 %v283
    %v355 = vpop.f32.mrb[0].mxu0
    %v356 = vadd.f32 %v224, %v355
    %v357 = vpop.f32.mrb[0].mxu0
    %v358 = vpop.f32.mrb[0].mxu0
    %v359 = vadd.f32 %v224, %v358
    %v360 = vpop.f32.mrb[0].mxu0
    %361 = vmatprep.mubr.bf16.mxu0 0
    %362 = vmatmul.mubr.bf16.gmra.mrb[0].mxu0 %v286
    %v363 = vpop.f32.mrb[0].mxu0
    %v364 = vadd.f32 %v224, %v363
    %v365 = vpop.f32.mrb[0].mxu0
    %v366 = vpop.f32.mrb[0].mxu0
    %v367 = vadd.f32 %v224, %v366
    %v368 = vpop.f32.mrb[0].mxu0
    %369 = vmatprep.mubr.bf16.mxu0 0
    %370 = vmatmul.mubr.bf16.gmra.mrb[0].mxu0 %v289
    %v371 = vpop.f32.mrb[0].mxu0
    %v372 = vadd.f32 %v224, %v371
    %v373 = vpop.f32.mrb[0].mxu0
    %v374 = vpop.f32.mrb[0].mxu0
    %v375 = vadd.f32 %v224, %v374
    %v376 = vpop.f32.mrb[0].mxu0
    %377 = vmatprep.mubr.bf16.mxu0 0
    %378 = vmatmul.mubr.bf16.gmra.mrb[0].mxu0 %v292
    %v379 = vpop.f32.mrb[0].mxu0
    %v380 = vadd.f32 %v224, %v379
    %v381 = vpop.f32.mrb[0].mxu0
    %v382 = vpop.f32.mrb[0].mxu0
    %v383 = vadd.f32 %v224, %v382
    %v384 = vpop.f32.mrb[0].mxu0
    %385 = vmatprep.mubr.bf16.mxu0 0
    %386 = vmatmul.mubr.bf16.gmra.mrb[0].mxu0 %v295
    %v387 = vpop.f32.mrb[0].mxu0
    %v388 = vadd.f32 %v224, %v387
    %v389 = vpop.f32.mrb[0].mxu0
    %v390 = vpop.f32.mrb[0].mxu0
    %v391 = vadd.f32 %v224, %v390
    %v392 = vpop.f32.mrb[0].mxu0
    %393 = vdwg.mxu0
    %v394 = vmax.f32 %v332, 0.0
    %v395 = vmax.f32 %v335, 0.0
    %v396 = vmax.f32 %v340, 0.0
    %v397 = vmax.f32 %v343, 0.0
    %v398 = vmax.f32 %v348, 0.0
    %v399 = vmax.f32 %v351, 0.0
    %v400 = vmax.f32 %v356, 0.0
    %v401 = vmax.f32 %v359, 0.0
    %v402 = vmax.f32 %v364, 0.0
    %v403 = vmax.f32 %v367, 0.0
    %v404 = vmax.f32 %v372, 0.0
    %v405 = vmax.f32 %v375, 0.0
    %v406 = vmax.f32 %v380, 0.0
    %v407 = vmax.f32 %v383, 0.0
    %v408 = vmax.f32 %v388, 0.0
    %v409 = vmax.f32 %v391, 0.0
    %v410 = vpack.c.bf16 %v395, %v394
    %v411 = vpack.c.bf16 %v397, %v396
    %v412 = vpack.c.bf16 %v399, %v398
    %v413 = vpack.c.bf16 %v401, %v400
    %v414 = vpack.c.bf16 %v403, %v402
    %v415 = vpack.c.bf16 %v405, %v404
    %v416 = vpack.c.bf16 %v407, %v406
    %v417 = vpack.c.bf16 %v409, %v408
    %v418 = vld [vmem:[#allocation8] sm:$0xf]
    %v419 = vld [vmem:[#allocation8 + $0x4] sm:$0xf]
    %v420 = vld [vmem:[#allocation8 + $0x8] sm:$0xf]
    %v421 = vld [vmem:[#allocation8 + $0xc] sm:$0xf]
    %v422 = vld [vmem:[#allocation9] sm:$0x1]
    %v424 = vlaneseq
    %v425 = vshrl.u32 %v424, 7
    %v426 = vsub.s32 0, %v425
    %v427 = vrot.slane %v422, %v426
    %v433 = vunpack.c.l.b16 %v418
    %v434 = vunpack.c.l.b16 %v419
    %v435 = vunpack.c.l.b16 %v420
    %v436 = vunpack.c.l.b16 %v421
    %v437 = vpack.c.b16 %v434, %v433
    %v438 = vpack.c.b16 %v436, %v435
    %vm441 = vcmask 261120
    %v443 = vsel %vm441, %v410, 0
    %v446 = vsel %vm441, %v411, 0
    %v449 = vsel %vm441, %v412, 0
    %v452 = vsel %vm441, %v413, 0
    %v455 = vsel %vm441, %v414, 0
    %v458 = vsel %vm441, %v415, 0
    %v461 = vsel %vm441, %v416, 0
    %v464 = vsel %vm441, %v417, 0
    %466 = vmatprep.subr.bf16.mxu0 0
    %467 = vmatpush1.bf16.msra.mxu0 %v437
    %468 = vmatprep.subr.bf16.mxu0 0
    %469 = vmatpush1.bf16.msra.mxu0 %v438
    %470 = vmatprep.subr.bf16.mxu0 0
    %471 = vmatpush1.bf16.msra.mxu0 0
    %472 = vmatprep.subr.bf16.mxu0 0
    %473 = vmatpush1.bf16.msra.mxu0 0
    %474 = vmatprep.subr.bf16.mxu0 0
    %475 = vmatpush1.bf16.msra.mxu0 0
    %476 = vmatprep.subr.bf16.mxu0 0
    %477 = vmatpush1.bf16.msra.mxu0 0
    %478 = vmatprep.subr.bf16.mxu0 0
    %479 = vmatpush1.bf16.msra.mxu0 0
    %480 = vmatprep.subr.bf16.mxu0 0
    %481 = vmatpush1.bf16.msra.mxu0 0
    %482 = vmatprep.subr.bf16.mxu0 0
    %483 = vmatpush1.bf16.msra.mxu0 0
    %484 = vmatprep.subr.bf16.mxu0 0
    %485 = vmatpush1.bf16.msra.mxu0 0
    %486 = vmatprep.subr.bf16.mxu0 0
    %487 = vmatpush1.bf16.msra.mxu0 0
    %488 = vmatprep.subr.bf16.mxu0 0
    %489 = vmatpush1.bf16.msra.mxu0 0
    %490 = vmatprep.subr.bf16.mxu0 0
    %491 = vmatpush1.bf16.msra.mxu0 0
    %492 = vmatprep.subr.bf16.mxu0 0
    %493 = vmatpush1.bf16.msra.mxu0 0
    %494 = vmatprep.subr.bf16.mxu0 0
    %495 = vmatpush1.bf16.msra.mxu0 0
    %496 = vmatprep.subr.bf16.mxu0 0
    %497 = vmatpush1.bf16.msra.mxu0 0
    %498 = vmatprep.mubr.bf16.mxu0 0
    %499 = vmatmul.mubr.bf16.gmra.mrb[0].mxu0 %v443
    %v500 = vpop.f32.mrb[0].mxu0
    %v501 = vadd.f32 %v427, %v500
    %v502 = vpop.f32.mrb[0].mxu0
    %v503 = vpop.f32.mrb[0].mxu0
    %v504 = vadd.f32 %v427, %v503
    %v505 = vpop.f32.mrb[0].mxu0
    %506 = vmatprep.mubr.bf16.mxu0 0
    %507 = vmatmul.mubr.bf16.gmra.mrb[0].mxu0 %v446
    %v508 = vpop.f32.mrb[0].mxu0
    %v509 = vadd.f32 %v427, %v508
    %v510 = vpop.f32.mrb[0].mxu0
    %v511 = vpop.f32.mrb[0].mxu0
    %v512 = vadd.f32 %v427, %v511
    %v513 = vpop.f32.mrb[0].mxu0
    %514 = vmatprep.mubr.bf16.mxu0 0
    %515 = vmatmul.mubr.bf16.gmra.mrb[0].mxu0 %v449
    %v516 = vpop.f32.mrb[0].mxu0
    %v517 = vadd.f32 %v427, %v516
    %v518 = vpop.f32.mrb[0].mxu0
    %v519 = vpop.f32.mrb[0].mxu0
    %v520 = vadd.f32 %v427, %v519
    %v521 = vpop.f32.mrb[0].mxu0
    %522 = vmatprep.mubr.bf16.mxu0 0
    %523 = vmatmul.mubr.bf16.gmra.mrb[0].mxu0 %v452
    %v524 = vpop.f32.mrb[0].mxu0
    %v525 = vadd.f32 %v427, %v524
    %v526 = vpop.f32.mrb[0].mxu0
    %v527 = vpop.f32.mrb[0].mxu0
    %v528 = vadd.f32 %v427, %v527
    %v529 = vpop.f32.mrb[0].mxu0
    %530 = vmatprep.mubr.bf16.mxu0 0
    %531 = vmatmul.mubr.bf16.gmra.mrb[0].mxu0 %v455
    %v532 = vpop.f32.mrb[0].mxu0
    %v533 = vadd.f32 %v427, %v532
    %v534 = vpop.f32.mrb[0].mxu0
    %v535 = vpop.f32.mrb[0].mxu0
    %v536 = vadd.f32 %v427, %v535
    %v537 = vpop.f32.mrb[0].mxu0
    %538 = vmatprep.mubr.bf16.mxu0 0
    %539 = vmatmul.mubr.bf16.gmra.mrb[0].mxu0 %v458
    %v540 = vpop.f32.mrb[0].mxu0
    %v541 = vadd.f32 %v427, %v540
    %v542 = vpop.f32.mrb[0].mxu0
    %v543 = vpop.f32.mrb[0].mxu0
    %v544 = vadd.f32 %v427, %v543
    %v545 = vpop.f32.mrb[0].mxu0
    %546 = vmatprep.mubr.bf16.mxu0 0
    %547 = vmatmul.mubr.bf16.gmra.mrb[0].mxu0 %v461
    %v548 = vpop.f32.mrb[0].mxu0
    %v549 = vadd.f32 %v427, %v548
    %v550 = vpop.f32.mrb[0].mxu0
    %v551 = vpop.f32.mrb[0].mxu0
    %v552 = vadd.f32 %v427, %v551
    %v553 = vpop.f32.mrb[0].mxu0
    %554 = vmatprep.mubr.bf16.mxu0 0
    %555 = vmatmul.mubr.bf16.gmra.mrb[0].mxu0 %v464
    %v556 = vpop.f32.mrb[0].mxu0
    %v557 = vadd.f32 %v427, %v556
    %v558 = vpop.f32.mrb[0].mxu0
    %v559 = vpop.f32.mrb[0].mxu0
    %v560 = vadd.f32 %v427, %v559
    %v561 = vpop.f32.mrb[0].mxu0
    %562 = vdwg.mxu0
    %v563 = vmax.f32 %v501, 0.0
    %v564 = vmax.f32 %v504, 0.0
    %v565 = vmax.f32 %v509, 0.0
    %v566 = vmax.f32 %v512, 0.0
    %v567 = vmax.f32 %v517, 0.0
    %v568 = vmax.f32 %v520, 0.0
    %v569 = vmax.f32 %v525, 0.0
    %v570 = vmax.f32 %v528, 0.0
    %v571 = vmax.f32 %v533, 0.0
    %v572 = vmax.f32 %v536, 0.0
    %v573 = vmax.f32 %v541, 0.0
    %v574 = vmax.f32 %v544, 0.0
    %v575 = vmax.f32 %v549, 0.0
    %v576 = vmax.f32 %v552, 0.0
    %v577 = vmax.f32 %v557, 0.0
    %v578 = vmax.f32 %v560, 0.0
    %v579 = vpack.c.bf16 %v564, %v563
    %v580 = vpack.c.bf16 %v566, %v565
    %v581 = vpack.c.bf16 %v568, %v567
    %v582 = vpack.c.bf16 %v570, %v569
    %v583 = vpack.c.bf16 %v572, %v571
    %v584 = vpack.c.bf16 %v574, %v573
    %v585 = vpack.c.bf16 %v576, %v575
    %v586 = vpack.c.bf16 %v578, %v577
    %v587 = vld [vmem:[#allocation11] sm:$0xf]
    %v588 = vld [vmem:[#allocation11 + $0x4] sm:$0xf]
    %v589 = vld [vmem:[#allocation11 + $0x8] sm:$0xf]
    %v590 = vld [vmem:[#allocation11 + $0xc] sm:$0xf]
    %v591 = vld [vmem:[#allocation11 + $0x10] sm:$0xf]
    %v592 = vld [vmem:[#allocation11 + $0x14] sm:$0xf]
    %v593 = vld [vmem:[#allocation11 + $0x18] sm:$0xf]
    %v594 = vld [vmem:[#allocation11 + $0x1c] sm:$0xf]
    %v595 = vld [vmem:[#allocation12] sm:$0x1]
    %v597 = vlaneseq
    %v598 = vshrl.u32 %v597, 7
    %v599 = vsub.s32 0, %v598
    %v600 = vrot.slane %v595, %v599
    %v610 = vunpack.c.l.b16 %v587
    %v611 = vunpack.c.l.b16 %v588
    %v612 = vunpack.c.l.b16 %v589
    %v613 = vunpack.c.l.b16 %v590
    %v614 = vunpack.c.l.b16 %v591
    %v615 = vunpack.c.l.b16 %v592
    %v616 = vunpack.c.l.b16 %v593
    %v617 = vunpack.c.l.b16 %v594
    %v618 = vpack.c.b16 %v611, %v610
    %v619 = vpack.c.b16 %v613, %v612
    %v620 = vpack.c.b16 %v615, %v614
    %v621 = vpack.c.b16 %v617, %v616
    %vm626 = vcmask 523264
    %v628 = vsel %vm626, %v579, 0
    %v631 = vsel %vm626, %v580, 0
    %v634 = vsel %vm626, %v581, 0
    %v637 = vsel %vm626, %v582, 0
    %v640 = vsel %vm626, %v583, 0
    %v643 = vsel %vm626, %v584, 0
    %v646 = vsel %vm626, %v585, 0
    %v649 = vsel %vm626, %v586, 0
    %651 = vmatprep.subr.bf16.mxu0 0
    %652 = vmatpush1.bf16.msra.mxu0 %v618
    %653 = vmatprep.subr.bf16.mxu0 0
    %654 = vmatpush1.bf16.msra.mxu0 %v619
    %655 = vmatprep.subr.bf16.mxu0 0
    %656 = vmatpush1.bf16.msra.mxu0 %v620
    %657 = vmatprep.subr.bf16.mxu0 0
    %658 = vmatpush1.bf16.msra.mxu0 %v621
    %659 = vmatprep.subr.bf16.mxu0 0
    %660 = vmatpush1.bf16.msra.mxu0 0
    %661 = vmatprep.subr.bf16.mxu0 0
    %662 = vmatpush1.bf16.msra.mxu0 0
    %663 = vmatprep.subr.bf16.mxu0 0
    %664 = vmatpush1.bf16.msra.mxu0 0
    %665 = vmatprep.subr.bf16.mxu0 0
    %666 = vmatpush1.bf16.msra.mxu0 0
    %667 = vmatprep.subr.bf16.mxu0 0
    %668 = vmatpush1.bf16.msra.mxu0 0
    %669 = vmatprep.subr.bf16.mxu0 0
    %670 = vmatpush1.bf16.msra.mxu0 0
    %671 = vmatprep.subr.bf16.mxu0 0
    %672 = vmatpush1.bf16.msra.mxu0 0
    %673 = vmatprep.subr.bf16.mxu0 0
    %674 = vmatpush1.bf16.msra.mxu0 0
    %675 = vmatprep.subr.bf16.mxu0 0
    %676 = vmatpush1.bf16.msra.mxu0 0
    %677 = vmatprep.subr.bf16.mxu0 0
    %678 = vmatpush1.bf16.msra.mxu0 0
    %679 = vmatprep.subr.bf16.mxu0 0
    %680 = vmatpush1.bf16.msra.mxu0 0
    %681 = vmatprep.subr.bf16.mxu0 0
    %682 = vmatpush1.bf16.msra.mxu0 0
    %683 = vmatprep.mubr.bf16.mxu0 0
    %684 = vmatmul.mubr.bf16.gmra.mrb[0].mxu0 %v628
    %v685 = vpop.f32.mrb[0].mxu0
    %v686 = vadd.f32 %v600, %v685
    %v687 = vpop.f32.mrb[0].mxu0
    %v688 = vpop.f32.mrb[0].mxu0
    %v689 = vadd.f32 %v600, %v688
    %v690 = vpop.f32.mrb[0].mxu0
    %691 = vmatprep.mubr.bf16.mxu0 0
    %692 = vmatmul.mubr.bf16.gmra.mrb[0].mxu0 %v631
    %v693 = vpop.f32.mrb[0].mxu0
    %v694 = vadd.f32 %v600, %v693
    %v695 = vpop.f32.mrb[0].mxu0
    %v696 = vpop.f32.mrb[0].mxu0
    %v697 = vadd.f32 %v600, %v696
    %v698 = vpop.f32.mrb[0].mxu0
    %699 = vmatprep.mubr.bf16.mxu0 0
    %700 = vmatmul.mubr.bf16.gmra.mrb[0].mxu0 %v634
    %v701 = vpop.f32.mrb[0].mxu0
    %v702 = vadd.f32 %v600, %v701
    %v703 = vpop.f32.mrb[0].mxu0
    %v704 = vpop.f32.mrb[0].mxu0
    %v705 = vadd.f32 %v600, %v704
    %v706 = vpop.f32.mrb[0].mxu0
    %707 = vmatprep.mubr.bf16.mxu0 0
    %708 = vmatmul.mubr.bf16.gmra.mrb[0].mxu0 %v637
    %v709 = vpop.f32.mrb[0].mxu0
    %v710 = vadd.f32 %v600, %v709
    %v711 = vpop.f32.mrb[0].mxu0
    %v712 = vpop.f32.mrb[0].mxu0
    %v713 = vadd.f32 %v600, %v712
    %v714 = vpop.f32.mrb[0].mxu0
    %715 = vmatprep.mubr.bf16.mxu0 0
    %716 = vmatmul.mubr.bf16.gmra.mrb[0].mxu0 %v640
    %v717 = vpop.f32.mrb[0].mxu0
    %v718 = vadd.f32 %v600, %v717
    %v719 = vpop.f32.mrb[0].mxu0
    %v720 = vpop.f32.mrb[0].mxu0
    %v721 = vadd.f32 %v600, %v720
    %v722 = vpop.f32.mrb[0].mxu0
    %723 = vmatprep.mubr.bf16.mxu0 0
    %724 = vmatmul.mubr.bf16.gmra.mrb[0].mxu0 %v643
    %v725 = vpop.f32.mrb[0].mxu0
    %v726 = vadd.f32 %v600, %v725
    %v727 = vpop.f32.mrb[0].mxu0
    %v728 = vpop.f32.mrb[0].mxu0
    %v729 = vadd.f32 %v600, %v728
    %v730 = vpop.f32.mrb[0].mxu0
    %731 = vmatprep.mubr.bf16.mxu0 0
    %732 = vmatmul.mubr.bf16.gmra.mrb[0].mxu0 %v646
    %v733 = vpop.f32.mrb[0].mxu0
    %v734 = vadd.f32 %v600, %v733
    %v735 = vpop.f32.mrb[0].mxu0
    %v736 = vpop.f32.mrb[0].mxu0
    %v737 = vadd.f32 %v600, %v736
    %v738 = vpop.f32.mrb[0].mxu0
    %739 = vmatprep.mubr.bf16.mxu0 0
    %740 = vmatmul.mubr.bf16.gmra.mrb[0].mxu0 %v649
    %v741 = vpop.f32.mrb[0].mxu0
    %v742 = vadd.f32 %v600, %v741
    %v743 = vpop.f32.mrb[0].mxu0
    %v744 = vpop.f32.mrb[0].mxu0
    %v745 = vadd.f32 %v600, %v744
    %v746 = vpop.f32.mrb[0].mxu0
    %747 = vdwg.mxu0
    %v748 = vmax.f32 %v686, 0.0
    %v749 = vmax.f32 %v689, 0.0
    %v750 = vmax.f32 %v694, 0.0
    %v751 = vmax.f32 %v697, 0.0
    %v752 = vmax.f32 %v702, 0.0
    %v753 = vmax.f32 %v705, 0.0
    %v754 = vmax.f32 %v710, 0.0
    %v755 = vmax.f32 %v713, 0.0
    %v756 = vmax.f32 %v718, 0.0
    %v757 = vmax.f32 %v721, 0.0
    %v758 = vmax.f32 %v726, 0.0
    %v759 = vmax.f32 %v729, 0.0
    %v760 = vmax.f32 %v734, 0.0
    %v761 = vmax.f32 %v737, 0.0
    %v762 = vmax.f32 %v742, 0.0
    %v763 = vmax.f32 %v745, 0.0
    %v764 = vpack.c.bf16 %v749, %v748
    %v765 = vpack.c.bf16 %v751, %v750
    %v766 = vpack.c.bf16 %v753, %v752
    %v767 = vpack.c.bf16 %v755, %v754
    %v768 = vpack.c.bf16 %v757, %v756
    %v769 = vpack.c.bf16 %v759, %v758
    %v770 = vpack.c.bf16 %v761, %v760
    %v771 = vpack.c.bf16 %v763, %v762
    %v772 = vld [vmem:[%s7] sm:$0xff]
    %v773 = vld [vmem:[%s7 + $0x8] sm:$0xff]
    %v774 = vld [vmem:[%s7 + $0x10] sm:$0xff]
    %v775 = vld [vmem:[%s7 + $0x18] sm:$0xff]
    %v776 = vld [vmem:[%s7 + $0x20] sm:$0xff]
    %v777 = vld [vmem:[%s7 + $0x28] sm:$0xff]
    %v778 = vld [vmem:[%s7 + $0x30] sm:$0xff]
    %v779 = vld [vmem:[%s7 + $0x38] sm:$0xff]
    %v780 = vld [vmem:[%s7 + $0x40] sm:$0xff]
    %v781 = vld [vmem:[%s7 + $0x48] sm:$0xff]
    %v782 = vld [vmem:[%s7 + $0x50] sm:$0xff]
    %v783 = vld [vmem:[%s7 + $0x58] sm:$0xff]
    %v784 = vld [vmem:[%s7 + $0x60] sm:$0xff]
    %v785 = vld [vmem:[%s7 + $0x68] sm:$0xff]
    %v786 = vld [vmem:[%s7 + $0x70] sm:$0xff]
    %v787 = vld [vmem:[%s7 + $0x78] sm:$0xff]
    %v788 = vld [vmem:[#allocation14] sm:$0x3]
    %v790 = vlaneseq
    %v791 = vshrl.u32 %v790, 7
    %v792 = vsub.s32 0, %v791
    %v793 = vrot.slane %v788, %v792
    %v794 = vlaneseq
    %v795 = vshrl.u32 %v794, 7
    %v796 = vsub.s32 1, %v795
    %v797 = vrot.slane %v788, %v796
    %v816 = vunpack.c.l.b16 %v772
    %v817 = vunpack.c.h.b16 %v772
    %v818 = vunpack.c.l.b16 %v773
    %v819 = vunpack.c.h.b16 %v773
    %v820 = vunpack.c.l.b16 %v774
    %v821 = vunpack.c.h.b16 %v774
    %v822 = vunpack.c.l.b16 %v775
    %v823 = vunpack.c.h.b16 %v775
    %v824 = vunpack.c.l.b16 %v776
    %v825 = vunpack.c.h.b16 %v776
    %v826 = vunpack.c.l.b16 %v777
    %v827 = vunpack.c.h.b16 %v777
    %v828 = vunpack.c.l.b16 %v778
    %v829 = vunpack.c.h.b16 %v778
    %v830 = vunpack.c.l.b16 %v779
    %v831 = vunpack.c.h.b16 %v779
    %v832 = vunpack.c.l.b16 %v780
    %v833 = vunpack.c.h.b16 %v780
    %v834 = vunpack.c.l.b16 %v781
    %v835 = vunpack.c.h.b16 %v781
    %v836 = vunpack.c.l.b16 %v782
    %v837 = vunpack.c.h.b16 %v782
    %v838 = vunpack.c.l.b16 %v783
    %v839 = vunpack.c.h.b16 %v783
    %v840 = vunpack.c.l.b16 %v784
    %v841 = vunpack.c.h.b16 %v784
    %v842 = vunpack.c.l.b16 %v785
    %v843 = vunpack.c.h.b16 %v785
    %v844 = vunpack.c.l.b16 %v786
    %v845 = vunpack.c.h.b16 %v786
    %v846 = vunpack.c.l.b16 %v787
    %v847 = vunpack.c.h.b16 %v787
    %v848 = vpack.c.b16 %v818, %v816
    %v849 = vpack.c.b16 %v819, %v817
    %v850 = vpack.c.b16 %v822, %v820
    %v851 = vpack.c.b16 %v823, %v821
    %v852 = vpack.c.b16 %v826, %v824
    %v853 = vpack.c.b16 %v827, %v825
    %v854 = vpack.c.b16 %v830, %v828
    %v855 = vpack.c.b16 %v831, %v829
    %v856 = vpack.c.b16 %v834, %v832
    %v857 = vpack.c.b16 %v835, %v833
    %v858 = vpack.c.b16 %v838, %v836
    %v859 = vpack.c.b16 %v839, %v837
    %v860 = vpack.c.b16 %v842, %v840
    %v861 = vpack.c.b16 %v843, %v841
    %v862 = vpack.c.b16 %v846, %v844
    %v863 = vpack.c.b16 %v847, %v845
    %880 = vmatprep.subr.bf16.mxu0 %v849
    %881 = vmatpush1.bf16.msra.mxu0 %v848
    %882 = vmatprep.subr.bf16.mxu0 %v851
    %883 = vmatpush1.bf16.msra.mxu0 %v850
    %884 = vmatprep.subr.bf16.mxu0 %v853
    %885 = vmatpush1.bf16.msra.mxu0 %v852
    %886 = vmatprep.subr.bf16.mxu0 %v855
    %887 = vmatpush1.bf16.msra.mxu0 %v854
    %888 = vmatprep.subr.bf16.mxu0 %v857
    %889 = vmatpush1.bf16.msra.mxu0 %v856
    %890 = vmatprep.subr.bf16.mxu0 %v859
    %891 = vmatpush1.bf16.msra.mxu0 %v858
    %892 = vmatprep.subr.bf16.mxu0 %v861
    %893 = vmatpush1.bf16.msra.mxu0 %v860
    %894 = vmatprep.subr.bf16.mxu0 %v863
    %895 = vmatpush1.bf16.msra.mxu0 %v862
    %896 = vmatprep.subr.bf16.mxu0 0
    %897 = vmatpush1.bf16.msra.mxu0 0
    %898 = vmatprep.subr.bf16.mxu0 0
    %899 = vmatpush1.bf16.msra.mxu0 0
    %900 = vmatprep.subr.bf16.mxu0 0
    %901 = vmatpush1.bf16.msra.mxu0 0
    %902 = vmatprep.subr.bf16.mxu0 0
    %903 = vmatpush1.bf16.msra.mxu0 0
    %904 = vmatprep.subr.bf16.mxu0 0
    %905 = vmatpush1.bf16.msra.mxu0 0
    %906 = vmatprep.subr.bf16.mxu0 0
    %907 = vmatpush1.bf16.msra.mxu0 0
    %908 = vmatprep.subr.bf16.mxu0 0
    %909 = vmatpush1.bf16.msra.mxu0 0
    %910 = vmatprep.subr.bf16.mxu0 0
    %911 = vmatpush1.bf16.msra.mxu0 0
    %912 = vmatprep.mubr.bf16.mxu0 0
    %913 = vmatmul.mubr.bf16.gmra.mrb[0].mxu0 %v764
    %v914 = vpop.f32.mrb[0].mxu0
    %v915 = vadd.f32 %v793, %v914
    %v916 = vpop.f32.mrb[0].mxu0
    %v917 = vadd.f32 %v797, %v916
    %v918 = vpop.f32.mrb[0].mxu0
    %v919 = vadd.f32 %v793, %v918
    %v920 = vpop.f32.mrb[0].mxu0
    %v921 = vadd.f32 %v797, %v920
    %922 = vmatprep.mubr.bf16.mxu0 0
    %923 = vmatmul.mubr.bf16.gmra.mrb[0].mxu0 %v765
    %v924 = vpop.f32.mrb[0].mxu0
    %v925 = vadd.f32 %v793, %v924
    %v926 = vpop.f32.mrb[0].mxu0
    %v927 = vadd.f32 %v797, %v926
    %v928 = vpop.f32.mrb[0].mxu0
    %v929 = vadd.f32 %v793, %v928
    %v930 = vpop.f32.mrb[0].mxu0
    %v931 = vadd.f32 %v797, %v930
    %932 = vmatprep.mubr.bf16.mxu0 0
    %933 = vmatmul.mubr.bf16.gmra.mrb[0].mxu0 %v766
    %v934 = vpop.f32.mrb[0].mxu0
    %v935 = vadd.f32 %v793, %v934
    %v936 = vpop.f32.mrb[0].mxu0
    %v937 = vadd.f32 %v797, %v936
    %v938 = vpop.f32.mrb[0].mxu0
    %v939 = vadd.f32 %v793, %v938
    %v940 = vpop.f32.mrb[0].mxu0
    %v941 = vadd.f32 %v797, %v940
    %942 = vmatprep.mubr.bf16.mxu0 0
    %943 = vmatmul.mubr.bf16.gmra.mrb[0].mxu0 %v767
    %v944 = vpop.f32.mrb[0].mxu0
    %v945 = vadd.f32 %v793, %v944
    %v946 = vpop.f32.mrb[0].mxu0
    %v947 = vadd.f32 %v797, %v946
    %v948 = vpop.f32.mrb[0].mxu0
    %v949 = vadd.f32 %v793, %v948
    %v950 = vpop.f32.mrb[0].mxu0
    %v951 = vadd.f32 %v797, %v950
    %952 = vmatprep.mubr.bf16.mxu0 0
    %953 = vmatmul.mubr.bf16.gmra.mrb[0].mxu0 %v768
    %v954 = vpop.f32.mrb[0].mxu0
    %v955 = vadd.f32 %v793, %v954
    %v956 = vpop.f32.mrb[0].mxu0
    %v957 = vadd.f32 %v797, %v956
    %v958 = vpop.f32.mrb[0].mxu0
    %v959 = vadd.f32 %v793, %v958
    %v960 = vpop.f32.mrb[0].mxu0
    %v961 = vadd.f32 %v797, %v960
    %962 = vmatprep.mubr.bf16.mxu0 0
    %963 = vmatmul.mubr.bf16.gmra.mrb[0].mxu0 %v769
    %v964 = vpop.f32.mrb[0].mxu0
    %v965 = vadd.f32 %v793, %v964
    %v966 = vpop.f32.mrb[0].mxu0
    %v967 = vadd.f32 %v797, %v966
    %v968 = vpop.f32.mrb[0].mxu0
    %v969 = vadd.f32 %v793, %v968
    %v970 = vpop.f32.mrb[0].mxu0
    %v971 = vadd.f32 %v797, %v970
    %972 = vmatprep.mubr.bf16.mxu0 0
    %973 = vmatmul.mubr.bf16.gmra.mrb[0].mxu0 %v770
    %v974 = vpop.f32.mrb[0].mxu0
    %v975 = vadd.f32 %v793, %v974
    %v976 = vpop.f32.mrb[0].mxu0
    %v977 = vadd.f32 %v797, %v976
    %v978 = vpop.f32.mrb[0].mxu0
    %v979 = vadd.f32 %v793, %v978
    %v980 = vpop.f32.mrb[0].mxu0
    %v981 = vadd.f32 %v797, %v980
    %982 = vmatprep.mubr.bf16.mxu0 0
    %983 = vmatmul.mubr.bf16.gmra.mrb[0].mxu0 %v771
    %v984 = vpop.f32.mrb[0].mxu0
    %v985 = vadd.f32 %v793, %v984
    %v986 = vpop.f32.mrb[0].mxu0
    %v987 = vadd.f32 %v797, %v986
    %v988 = vpop.f32.mrb[0].mxu0
    %v989 = vadd.f32 %v793, %v988
    %v990 = vpop.f32.mrb[0].mxu0
    %v991 = vadd.f32 %v797, %v990
    %992 = vdwg.mxu0
    %v993 = vmax.f32 %v915, 0.0
    %v994 = vmax.f32 %v917, 0.0
    %v995 = vmax.f32 %v919, 0.0
    %v996 = vmax.f32 %v921, 0.0
    %v997 = vmax.f32 %v925, 0.0
    %v998 = vmax.f32 %v927, 0.0
    %v999 = vmax.f32 %v929, 0.0
    %v1000 = vmax.f32 %v931, 0.0
    %v1001 = vmax.f32 %v935, 0.0
    %v1002 = vmax.f32 %v937, 0.0
    %v1003 = vmax.f32 %v939, 0.0
    %v1004 = vmax.f32 %v941, 0.0
    %v1005 = vmax.f32 %v945, 0.0
    %v1006 = vmax.f32 %v947, 0.0
    %v1007 = vmax.f32 %v949, 0.0
    %v1008 = vmax.f32 %v951, 0.0
    %v1009 = vmax.f32 %v955, 0.0
    %v1010 = vmax.f32 %v957, 0.0
    %v1011 = vmax.f32 %v959, 0.0
    %v1012 = vmax.f32 %v961, 0.0
    %v1013 = vmax.f32 %v965, 0.0
    %v1014 = vmax.f32 %v967, 0.0
    %v1015 = vmax.f32 %v969, 0.0
    %v1016 = vmax.f32 %v971, 0.0
    %v1017 = vmax.f32 %v975, 0.0
    %v1018 = vmax.f32 %v977, 0.0
    %v1019 = vmax.f32 %v979, 0.0
    %v1020 = vmax.f32 %v981, 0.0
    %v1021 = vmax.f32 %v985, 0.0
    %v1022 = vmax.f32 %v987, 0.0
    %v1023 = vmax.f32 %v989, 0.0
    %v1024 = vmax.f32 %v991, 0.0
    %v1025 = vpack.c.bf16 %v995, %v993
    %v1026 = vpack.c.bf16 %v996, %v994
    %v1027 = vpack.c.bf16 %v999, %v997
    %v1028 = vpack.c.bf16 %v1000, %v998
    %v1029 = vpack.c.bf16 %v1003, %v1001
    %v1030 = vpack.c.bf16 %v1004, %v1002
    %v1031 = vpack.c.bf16 %v1007, %v1005
    %v1032 = vpack.c.bf16 %v1008, %v1006
    %v1033 = vpack.c.bf16 %v1011, %v1009
    %v1034 = vpack.c.bf16 %v1012, %v1010
    %v1035 = vpack.c.bf16 %v1015, %v1013
    %v1036 = vpack.c.bf16 %v1016, %v1014
    %v1037 = vpack.c.bf16 %v1019, %v1017
    %v1038 = vpack.c.bf16 %v1020, %v1018
    %v1039 = vpack.c.bf16 %v1023, %v1021
    %v1040 = vpack.c.bf16 %v1024, %v1022
    %v1041 = vld [vmem:[#allocation15] sm:$0xff]
    %v1042 = vld [vmem:[#allocation15 + $0x8] sm:$0xff]
    %v1043 = vld [vmem:[#allocation15 + $0x10] sm:$0xff]
    %v1044 = vld [vmem:[#allocation15 + $0x18] sm:$0xff]
    %v1045 = vld [vmem:[#allocation15 + $0x20] sm:$0xff]
    %v1046 = vld [vmem:[#allocation15 + $0x28] sm:$0xff]
    %v1047 = vld [vmem:[#allocation15 + $0x30] sm:$0xff]
    %v1048 = vld [vmem:[#allocation15 + $0x38] sm:$0xff]
    %v1049 = vld [vmem:[#allocation15 + $0x40] sm:$0xff]
    %v1050 = vld [vmem:[#allocation15 + $0x48] sm:$0xff]
    %v1051 = vld [vmem:[#allocation15 + $0x50] sm:$0xff]
    %v1052 = vld [vmem:[#allocation15 + $0x58] sm:$0xff]
    %v1053 = vld [vmem:[#allocation15 + $0x60] sm:$0xff]
    %v1054 = vld [vmem:[#allocation15 + $0x68] sm:$0xff]
    %v1055 = vld [vmem:[#allocation15 + $0x70] sm:$0xff]
    %v1056 = vld [vmem:[#allocation15 + $0x78] sm:$0xff]
    %v1057 = vld [vmem:[#allocation15 + $0x80] sm:$0xff]
    %v1058 = vld [vmem:[#allocation15 + $0x88] sm:$0xff]
    %v1059 = vld [vmem:[#allocation15 + $0x90] sm:$0xff]
    %v1060 = vld [vmem:[#allocation15 + $0x98] sm:$0xff]
    %v1061 = vld [vmem:[#allocation15 + $0xa0] sm:$0xff]
    %v1062 = vld [vmem:[#allocation15 + $0xa8] sm:$0xff]
    %v1063 = vld [vmem:[#allocation15 + $0xb0] sm:$0xff]
    %v1064 = vld [vmem:[#allocation15 + $0xb8] sm:$0xff]
    %v1065 = vld [vmem:[#allocation15 + $0xc0] sm:$0xff]
    %v1066 = vld [vmem:[#allocation15 + $0xc8] sm:$0xff]
    %v1067 = vld [vmem:[#allocation15 + $0xd0] sm:$0xff]
    %v1068 = vld [vmem:[#allocation15 + $0xd8] sm:$0xff]
    %v1069 = vld [vmem:[#allocation15 + $0xe0] sm:$0xff]
    %v1070 = vld [vmem:[#allocation15 + $0xe8] sm:$0xff]
    %v1071 = vld [vmem:[#allocation15 + $0xf0] sm:$0xff]
    %v1072 = vld [vmem:[#allocation15 + $0xf8] sm:$0xff]
    %v1073 = vld [vmem:[#allocation17] sm:$0x3]
    %v1075 = vlaneseq
    %v1076 = vshrl.u32 %v1075, 7
    %v1077 = vsub.s32 0, %v1076
    %v1078 = vrot.slane %v1073, %v1077
    %v1079 = vlaneseq
    %v1080 = vshrl.u32 %v1079, 7
    %v1081 = vsub.s32 1, %v1080
    %v1082 = vrot.slane %v1073, %v1081
    %v1117 = vunpack.c.l.b16 %v1041
    %v1118 = vunpack.c.h.b16 %v1041
    %v1119 = vunpack.c.l.b16 %v1042
    %v1120 = vunpack.c.h.b16 %v1042
    %v1121 = vunpack.c.l.b16 %v1043
    %v1122 = vunpack.c.h.b16 %v1043
    %v1123 = vunpack.c.l.b16 %v1044
    %v1124 = vunpack.c.h.b16 %v1044
    %v1125 = vunpack.c.l.b16 %v1045
    %v1126 = vunpack.c.h.b16 %v1045
    %v1127 = vunpack.c.l.b16 %v1046
    %v1128 = vunpack.c.h.b16 %v1046
    %v1129 = vunpack.c.l.b16 %v1047
    %v1130 = vunpack.c.h.b16 %v1047
    %v1131 = vunpack.c.l.b16 %v1048
    %v1132 = vunpack.c.h.b16 %v1048
    %v1133 = vunpack.c.l.b16 %v1049
    %v1134 = vunpack.c.h.b16 %v1049
    %v1135 = vunpack.c.l.b16 %v1050
    %v1136 = vunpack.c.h.b16 %v1050
    %v1137 = vunpack.c.l.b16 %v1051
    %v1138 = vunpack.c.h.b16 %v1051
    %v1139 = vunpack.c.l.b16 %v1052
    %v1140 = vunpack.c.h.b16 %v1052
    %v1141 = vunpack.c.l.b16 %v1053
    %v1142 = vunpack.c.h.b16 %v1053
    %v1143 = vunpack.c.l.b16 %v1054
    %v1144 = vunpack.c.h.b16 %v1054
    %v1145 = vunpack.c.l.b16 %v1055
    %v1146 = vunpack.c.h.b16 %v1055
    %v1147 = vunpack.c.l.b16 %v1056
    %v1148 = vunpack.c.h.b16 %v1056
    %v1149 = vunpack.c.l.b16 %v1057
    %v1150 = vunpack.c.h.b16 %v1057
    %v1151 = vunpack.c.l.b16 %v1058
    %v1152 = vunpack.c.h.b16 %v1058
    %v1153 = vunpack.c.l.b16 %v1059
    %v1154 = vunpack.c.h.b16 %v1059
    %v1155 = vunpack.c.l.b16 %v1060
    %v1156 = vunpack.c.h.b16 %v1060
    %v1157 = vunpack.c.l.b16 %v1061
    %v1158 = vunpack.c.h.b16 %v1061
    %v1159 = vunpack.c.l.b16 %v1062
    %v1160 = vunpack.c.h.b16 %v1062
    %v1161 = vunpack.c.l.b16 %v1063
    %v1162 = vunpack.c.h.b16 %v1063
    %v1163 = vunpack.c.l.b16 %v1064
    %v1164 = vunpack.c.h.b16 %v1064
    %v1165 = vunpack.c.l.b16 %v1065
    %v1166 = vunpack.c.h.b16 %v1065
    %v1167 = vunpack.c.l.b16 %v1066
    %v1168 = vunpack.c.h.b16 %v1066
    %v1169 = vunpack.c.l.b16 %v1067
    %v1170 = vunpack.c.h.b16 %v1067
    %v1171 = vunpack.c.l.b16 %v1068
    %v1172 = vunpack.c.h.b16 %v1068
    %v1173 = vunpack.c.l.b16 %v1069
    %v1174 = vunpack.c.h.b16 %v1069
    %v1175 = vunpack.c.l.b16 %v1070
    %v1176 = vunpack.c.h.b16 %v1070
    %v1177 = vunpack.c.l.b16 %v1071
    %v1178 = vunpack.c.h.b16 %v1071
    %v1179 = vunpack.c.l.b16 %v1072
    %v1180 = vunpack.c.h.b16 %v1072
    %v1181 = vpack.c.b16 %v1119, %v1117
    %v1182 = vpack.c.b16 %v1120, %v1118
    %v1183 = vpack.c.b16 %v1123, %v1121
    %v1184 = vpack.c.b16 %v1124, %v1122
    %v1185 = vpack.c.b16 %v1127, %v1125
    %v1186 = vpack.c.b16 %v1128, %v1126
    %v1187 = vpack.c.b16 %v1131, %v1129
    %v1188 = vpack.c.b16 %v1132, %v1130
    %v1189 = vpack.c.b16 %v1135, %v1133
    %v1190 = vpack.c.b16 %v1136, %v1134
    %v1191 = vpack.c.b16 %v1139, %v1137
    %v1192 = vpack.c.b16 %v1140, %v1138
    %v1193 = vpack.c.b16 %v1143, %v1141
    %v1194 = vpack.c.b16 %v1144, %v1142
    %v1195 = vpack.c.b16 %v1147, %v1145
    %v1196 = vpack.c.b16 %v1148, %v1146
    %v1197 = vpack.c.b16 %v1151, %v1149
    %v1198 = vpack.c.b16 %v1152, %v1150
    %v1199 = vpack.c.b16 %v1155, %v1153
    %v1200 = vpack.c.b16 %v1156, %v1154
    %v1201 = vpack.c.b16 %v1159, %v1157
    %v1202 = vpack.c.b16 %v1160, %v1158
    %v1203 = vpack.c.b16 %v1163, %v1161
    %v1204 = vpack.c.b16 %v1164, %v1162
    %v1205 = vpack.c.b16 %v1167, %v1165
    %v1206 = vpack.c.b16 %v1168, %v1166
    %v1207 = vpack.c.b16 %v1171, %v1169
    %v1208 = vpack.c.b16 %v1172, %v1170
    %v1209 = vpack.c.b16 %v1175, %v1173
    %v1210 = vpack.c.b16 %v1176, %v1174
    %v1211 = vpack.c.b16 %v1179, %v1177
    %v1212 = vpack.c.b16 %v1180, %v1178
    %1245 = vmatprep.subr.bf16.mxu0 %v1182
    %1246 = vmatpush1.bf16.msra.mxu0 %v1181
    %1247 = vmatprep.subr.bf16.mxu0 %v1184
    %1248 = vmatpush1.bf16.msra.mxu0 %v1183
    %1249 = vmatprep.subr.bf16.mxu0 %v1186
    %1250 = vmatpush1.bf16.msra.mxu0 %v1185
    %1251 = vmatprep.subr.bf16.mxu0 %v1188
    %1252 = vmatpush1.bf16.msra.mxu0 %v1187
    %1253 = vmatprep.subr.bf16.mxu0 %v1190
    %1254 = vmatpush1.bf16.msra.mxu0 %v1189
    %1255 = vmatprep.subr.bf16.mxu0 %v1192
    %1256 = vmatpush1.bf16.msra.mxu0 %v1191
    %1257 = vmatprep.subr.bf16.mxu0 %v1194
    %1258 = vmatpush1.bf16.msra.mxu0 %v1193
    %1259 = vmatprep.subr.bf16.mxu0 %v1196
    %1260 = vmatpush1.bf16.msra.mxu0 %v1195
    %1261 = vmatprep.subr.bf16.mxu0 %v1198
    %1262 = vmatpush1.bf16.msra.mxu0 %v1197
    %1263 = vmatprep.subr.bf16.mxu0 %v1200
    %1264 = vmatpush1.bf16.msra.mxu0 %v1199
    %1265 = vmatprep.subr.bf16.mxu0 %v1202
    %1266 = vmatpush1.bf16.msra.mxu0 %v1201
    %1267 = vmatprep.subr.bf16.mxu0 %v1204
    %1268 = vmatpush1.bf16.msra.mxu0 %v1203
    %1269 = vmatprep.subr.bf16.mxu0 %v1206
    %1270 = vmatpush1.bf16.msra.mxu0 %v1205
    %1271 = vmatprep.subr.bf16.mxu0 %v1208
    %1272 = vmatpush1.bf16.msra.mxu0 %v1207
    %1273 = vmatprep.subr.bf16.mxu0 %v1210
    %1274 = vmatpush1.bf16.msra.mxu0 %v1209
    %1275 = vmatprep.subr.bf16.mxu0 %v1212
    %1276 = vmatpush1.bf16.msra.mxu0 %v1211
    %1277 = vmatprep.mubr.bf16.mxu0 %v1026
    %1278 = vmatmul.mubr.bf16.gmra.mrb[0].mxu0 %v1025
    %v1279 = vpop.f32.mrb[0].mxu0
    %v1280 = vadd.f32 %v1078, %v1279
    %v1281 = vpop.f32.mrb[0].mxu0
    %v1282 = vadd.f32 %v1082, %v1281
    %v1283 = vpop.f32.mrb[0].mxu0
    %v1284 = vadd.f32 %v1078, %v1283
    %v1285 = vpop.f32.mrb[0].mxu0
    %v1286 = vadd.f32 %v1082, %v1285
    %1287 = vmatprep.mubr.bf16.mxu0 %v1028
    %1288 = vmatmul.mubr.bf16.gmra.mrb[0].mxu0 %v1027
    %v1289 = vpop.f32.mrb[0].mxu0
    %v1290 = vadd.f32 %v1078, %v1289
    %v1291 = vpop.f32.mrb[0].mxu0
    %v1292 = vadd.f32 %v1082, %v1291
    %v1293 = vpop.f32.mrb[0].mxu0
    %v1294 = vadd.f32 %v1078, %v1293
    %v1295 = vpop.f32.mrb[0].mxu0
    %v1296 = vadd.f32 %v1082, %v1295
    %1297 = vmatprep.mubr.bf16.mxu0 %v1030
    %1298 = vmatmul.mubr.bf16.gmra.mrb[0].mxu0 %v1029
    %v1299 = vpop.f32.mrb[0].mxu0
    %v1300 = vadd.f32 %v1078, %v1299
    %v1301 = vpop.f32.mrb[0].mxu0
    %v1302 = vadd.f32 %v1082, %v1301
    %v1303 = vpop.f32.mrb[0].mxu0
    %v1304 = vadd.f32 %v1078, %v1303
    %v1305 = vpop.f32.mrb[0].mxu0
    %v1306 = vadd.f32 %v1082, %v1305
    %1307 = vmatprep.mubr.bf16.mxu0 %v1032
    %1308 = vmatmul.mubr.bf16.gmra.mrb[0].mxu0 %v1031
    %v1309 = vpop.f32.mrb[0].mxu0
    %v1310 = vadd.f32 %v1078, %v1309
    %v1311 = vpop.f32.mrb[0].mxu0
    %v1312 = vadd.f32 %v1082, %v1311
    %v1313 = vpop.f32.mrb[0].mxu0
    %v1314 = vadd.f32 %v1078, %v1313
    %v1315 = vpop.f32.mrb[0].mxu0
    %v1316 = vadd.f32 %v1082, %v1315
    %1317 = vmatprep.mubr.bf16.mxu0 %v1034
    %1318 = vmatmul.mubr.bf16.gmra.mrb[0].mxu0 %v1033
    %v1319 = vpop.f32.mrb[0].mxu0
    %v1320 = vadd.f32 %v1078, %v1319
    %v1321 = vpop.f32.mrb[0].mxu0
    %v1322 = vadd.f32 %v1082, %v1321
    %v1323 = vpop.f32.mrb[0].mxu0
    %v1324 = vadd.f32 %v1078, %v1323
    %v1325 = vpop.f32.mrb[0].mxu0
    %v1326 = vadd.f32 %v1082, %v1325
    %1327 = vmatprep.mubr.bf16.mxu0 %v1036
    %1328 = vmatmul.mubr.bf16.gmra.mrb[0].mxu0 %v1035
    %v1329 = vpop.f32.mrb[0].mxu0
    %v1330 = vadd.f32 %v1078, %v1329
    %v1331 = vpop.f32.mrb[0].mxu0
    %v1332 = vadd.f32 %v1082, %v1331
    %v1333 = vpop.f32.mrb[0].mxu0
    %v1334 = vadd.f32 %v1078, %v1333
    %v1335 = vpop.f32.mrb[0].mxu0
    %v1336 = vadd.f32 %v1082, %v1335
    %1337 = vmatprep.mubr.bf16.mxu0 %v1038
    %1338 = vmatmul.mubr.bf16.gmra.mrb[0].mxu0 %v1037
    %v1339 = vpop.f32.mrb[0].mxu0
    %v1340 = vadd.f32 %v1078, %v1339
    %v1341 = vpop.f32.mrb[0].mxu0
    %v1342 = vadd.f32 %v1082, %v1341
    %v1343 = vpop.f32.mrb[0].mxu0
    %v1344 = vadd.f32 %v1078, %v1343
    %v1345 = vpop.f32.mrb[0].mxu0
    %v1346 = vadd.f32 %v1082, %v1345
    %1347 = vmatprep.mubr.bf16.mxu0 %v1040
    %1348 = vmatmul.mubr.bf16.gmra.mrb[0].mxu0 %v1039
    %v1349 = vpop.f32.mrb[0].mxu0
    %v1350 = vadd.f32 %v1078, %v1349
    %v1351 = vpop.f32.mrb[0].mxu0
    %v1352 = vadd.f32 %v1082, %v1351
    %v1353 = vpop.f32.mrb[0].mxu0
    %v1354 = vadd.f32 %v1078, %v1353
    %v1355 = vpop.f32.mrb[0].mxu0
    %v1356 = vadd.f32 %v1082, %v1355
    %1357 = vdwg.mxu0
    %v1358 = vmax.f32 %v1280, 0.0
    %v1359 = vmax.f32 %v1282, 0.0
    %v1360 = vmax.f32 %v1284, 0.0
    %v1361 = vmax.f32 %v1286, 0.0
    %v1362 = vmax.f32 %v1290, 0.0
    %v1363 = vmax.f32 %v1292, 0.0
    %v1364 = vmax.f32 %v1294, 0.0
    %v1365 = vmax.f32 %v1296, 0.0
    %v1366 = vmax.f32 %v1300, 0.0
    %v1367 = vmax.f32 %v1302, 0.0
    %v1368 = vmax.f32 %v1304, 0.0
    %v1369 = vmax.f32 %v1306, 0.0
    %v1370 = vmax.f32 %v1310, 0.0
    %v1371 = vmax.f32 %v1312, 0.0
    %v1372 = vmax.f32 %v1314, 0.0
    %v1373 = vmax.f32 %v1316, 0.0
    %v1374 = vmax.f32 %v1320, 0.0
    %v1375 = vmax.f32 %v1322, 0.0
    %v1376 = vmax.f32 %v1324, 0.0
    %v1377 = vmax.f32 %v1326, 0.0
    %v1378 = vmax.f32 %v1330, 0.0
    %v1379 = vmax.f32 %v1332, 0.0
    %v1380 = vmax.f32 %v1334, 0.0
    %v1381 = vmax.f32 %v1336, 0.0
    %v1382 = vmax.f32 %v1340, 0.0
    %v1383 = vmax.f32 %v1342, 0.0
    %v1384 = vmax.f32 %v1344, 0.0
    %v1385 = vmax.f32 %v1346, 0.0
    %v1386 = vmax.f32 %v1350, 0.0
    %v1387 = vmax.f32 %v1352, 0.0
    %v1388 = vmax.f32 %v1354, 0.0
    %v1389 = vmax.f32 %v1356, 0.0
    %v1390 = vpack.c.bf16 %v1360, %v1358
    %v1391 = vpack.c.bf16 %v1361, %v1359
    %v1392 = vpack.c.bf16 %v1364, %v1362
    %v1393 = vpack.c.bf16 %v1365, %v1363
    %v1394 = vpack.c.bf16 %v1368, %v1366
    %v1395 = vpack.c.bf16 %v1369, %v1367
    %v1396 = vpack.c.bf16 %v1372, %v1370
    %v1397 = vpack.c.bf16 %v1373, %v1371
    %v1398 = vpack.c.bf16 %v1376, %v1374
    %v1399 = vpack.c.bf16 %v1377, %v1375
    %v1400 = vpack.c.bf16 %v1380, %v1378
    %v1401 = vpack.c.bf16 %v1381, %v1379
    %v1402 = vpack.c.bf16 %v1384, %v1382
    %v1403 = vpack.c.bf16 %v1385, %v1383
    %v1404 = vpack.c.bf16 %v1388, %v1386
    %v1405 = vpack.c.bf16 %v1389, %v1387
    %v1406 = vld [vmem:[%s11] sm:$0xf]
    %v1407 = vld [vmem:[%s11 + $0x4] sm:$0xf]
    %v1408 = vld [vmem:[%s11 + $0x8] sm:$0xf]
    %v1409 = vld [vmem:[%s11 + $0xc] sm:$0xf]
    %v1410 = vld [vmem:[%s11 + $0x10] sm:$0xf]
    %v1411 = vld [vmem:[%s11 + $0x14] sm:$0xf]
    %v1412 = vld [vmem:[%s11 + $0x18] sm:$0xf]
    %v1413 = vld [vmem:[%s11 + $0x1c] sm:$0xf]
    %v1414 = vld [vmem:[%s11 + $0x20] sm:$0xf]
    %v1415 = vld [vmem:[%s11 + $0x24] sm:$0xf]
    %v1416 = vld [vmem:[%s11 + $0x28] sm:$0xf]
    %v1417 = vld [vmem:[%s11 + $0x2c] sm:$0xf]
    %v1418 = vld [vmem:[%s11 + $0x30] sm:$0xf]
    %v1419 = vld [vmem:[%s11 + $0x34] sm:$0xf]
    %v1420 = vld [vmem:[%s11 + $0x38] sm:$0xf]
    %v1421 = vld [vmem:[%s11 + $0x3c] sm:$0xf]
    %v1422 = vld [vmem:[%s11 + $0x40] sm:$0xf]
    %v1423 = vld [vmem:[%s11 + $0x44] sm:$0xf]
    %v1424 = vld [vmem:[%s11 + $0x48] sm:$0xf]
    %v1425 = vld [vmem:[%s11 + $0x4c] sm:$0xf]
    %v1426 = vld [vmem:[%s11 + $0x50] sm:$0xf]
    %v1427 = vld [vmem:[%s11 + $0x54] sm:$0xf]
    %v1428 = vld [vmem:[%s11 + $0x58] sm:$0xf]
    %v1429 = vld [vmem:[%s11 + $0x5c] sm:$0xf]
    %v1430 = vld [vmem:[%s11 + $0x60] sm:$0xf]
    %v1431 = vld [vmem:[%s11 + $0x64] sm:$0xf]
    %v1432 = vld [vmem:[%s11 + $0x68] sm:$0xf]
    %v1433 = vld [vmem:[%s11 + $0x6c] sm:$0xf]
    %v1434 = vld [vmem:[%s11 + $0x70] sm:$0xf]
    %v1435 = vld [vmem:[%s11 + $0x74] sm:$0xf]
    %v1436 = vld [vmem:[%s11 + $0x78] sm:$0xf]
    %v1437 = vld [vmem:[%s11 + $0x7c] sm:$0xf]
    %v1438 = vld [vmem:[#allocation18] sm:$0x1]
    %v1440 = vlaneseq
    %v1441 = vshrl.u32 %v1440, 7
    %v1442 = vsub.s32 0, %v1441
    %v1443 = vrot.slane %v1438, %v1442
    %v1477 = vunpack.c.l.b16 %v1406
    %v1478 = vunpack.c.l.b16 %v1407
    %v1479 = vunpack.c.l.b16 %v1408
    %v1480 = vunpack.c.l.b16 %v1409
    %v1481 = vunpack.c.l.b16 %v1410
    %v1482 = vunpack.c.l.b16 %v1411
    %v1483 = vunpack.c.l.b16 %v1412
    %v1484 = vunpack.c.l.b16 %v1413
    %v1485 = vunpack.c.l.b16 %v1414
    %v1486 = vunpack.c.l.b16 %v1415
    %v1487 = vunpack.c.l.b16 %v1416
    %v1488 = vunpack.c.l.b16 %v1417
    %v1489 = vunpack.c.l.b16 %v1418
    %v1490 = vunpack.c.l.b16 %v1419
    %v1491 = vunpack.c.l.b16 %v1420
    %v1492 = vunpack.c.l.b16 %v1421
    %v1493 = vunpack.c.l.b16 %v1422
    %v1494 = vunpack.c.l.b16 %v1423
    %v1495 = vunpack.c.l.b16 %v1424
    %v1496 = vunpack.c.l.b16 %v1425
    %v1497 = vunpack.c.l.b16 %v1426
    %v1498 = vunpack.c.l.b16 %v1427
    %v1499 = vunpack.c.l.b16 %v1428
    %v1500 = vunpack.c.l.b16 %v1429
    %v1501 = vunpack.c.l.b16 %v1430
    %v1502 = vunpack.c.l.b16 %v1431
    %v1503 = vunpack.c.l.b16 %v1432
    %v1504 = vunpack.c.l.b16 %v1433
    %v1505 = vunpack.c.l.b16 %v1434
    %v1506 = vunpack.c.l.b16 %v1435
    %v1507 = vunpack.c.l.b16 %v1436
    %v1508 = vunpack.c.l.b16 %v1437
    %v1509 = vpack.c.b16 %v1478, %v1477
    %v1510 = vpack.c.b16 %v1480, %v1479
    %v1511 = vpack.c.b16 %v1482, %v1481
    %v1512 = vpack.c.b16 %v1484, %v1483
    %v1513 = vpack.c.b16 %v1486, %v1485
    %v1514 = vpack.c.b16 %v1488, %v1487
    %v1515 = vpack.c.b16 %v1490, %v1489
    %v1516 = vpack.c.b16 %v1492, %v1491
    %v1517 = vpack.c.b16 %v1494, %v1493
    %v1518 = vpack.c.b16 %v1496, %v1495
    %v1519 = vpack.c.b16 %v1498, %v1497
    %v1520 = vpack.c.b16 %v1500, %v1499
    %v1521 = vpack.c.b16 %v1502, %v1501
    %v1522 = vpack.c.b16 %v1504, %v1503
    %v1523 = vpack.c.b16 %v1506, %v1505
    %v1524 = vpack.c.b16 %v1508, %v1507
    %1541 = vmatprep.subr.bf16.mxu0 0
    %1542 = vmatpush1.bf16.msra.mxu0 %v1509
    %1543 = vmatprep.subr.bf16.mxu0 0
    %1544 = vmatpush1.bf16.msra.mxu0 %v1510
    %1545 = vmatprep.subr.bf16.mxu0 0
    %1546 = vmatpush1.bf16.msra.mxu0 %v1511
    %1547 = vmatprep.subr.bf16.mxu0 0
    %1548 = vmatpush1.bf16.msra.mxu0 %v1512
    %1549 = vmatprep.subr.bf16.mxu0 0
    %1550 = vmatpush1.bf16.msra.mxu0 %v1513
    %1551 = vmatprep.subr.bf16.mxu0 0
    %1552 = vmatpush1.bf16.msra.mxu0 %v1514
    %1553 = vmatprep.subr.bf16.mxu0 0
    %1554 = vmatpush1.bf16.msra.mxu0 %v1515
    %1555 = vmatprep.subr.bf16.mxu0 0
    %1556 = vmatpush1.bf16.msra.mxu0 %v1516
    %1557 = vmatprep.subr.bf16.mxu0 0
    %1558 = vmatpush1.bf16.msra.mxu0 %v1517
    %1559 = vmatprep.subr.bf16.mxu0 0
    %1560 = vmatpush1.bf16.msra.mxu0 %v1518
    %1561 = vmatprep.subr.bf16.mxu0 0
    %1562 = vmatpush1.bf16.msra.mxu0 %v1519
    %1563 = vmatprep.subr.bf16.mxu0 0
    %1564 = vmatpush1.bf16.msra.mxu0 %v1520
    %1565 = vmatprep.subr.bf16.mxu0 0
    %1566 = vmatpush1.bf16.msra.mxu0 %v1521
    %1567 = vmatprep.subr.bf16.mxu0 0
    %1568 = vmatpush1.bf16.msra.mxu0 %v1522
    %1569 = vmatprep.subr.bf16.mxu0 0
    %1570 = vmatpush1.bf16.msra.mxu0 %v1523
    %1571 = vmatprep.subr.bf16.mxu0 0
    %1572 = vmatpush1.bf16.msra.mxu0 %v1524
    %1573 = vmatprep.mubr.bf16.mxu0 %v1391
    %1574 = vmatmul.mubr.bf16.gmra.mrb[0].mxu0 %v1390
    %v1575 = vpop.f32.mrb[0].mxu0
    %v1576 = vadd.f32 %v1443, %v1575
    %v1577 = vpop.f32.mrb[0].mxu0
    %v1578 = vpop.f32.mrb[0].mxu0
    %v1579 = vadd.f32 %v1443, %v1578
    %v1580 = vpop.f32.mrb[0].mxu0
    %1581 = vmatprep.mubr.bf16.mxu0 %v1393
    %1582 = vmatmul.mubr.bf16.gmra.mrb[0].mxu0 %v1392
    %v1583 = vpop.f32.mrb[0].mxu0
    %v1584 = vadd.f32 %v1443, %v1583
    %v1585 = vpop.f32.mrb[0].mxu0
    %v1586 = vpop.f32.mrb[0].mxu0
    %v1587 = vadd.f32 %v1443, %v1586
    %v1588 = vpop.f32.mrb[0].mxu0
    %1589 = vmatprep.mubr.bf16.mxu0 %v1395
    %1590 = vmatmul.mubr.bf16.gmra.mrb[0].mxu0 %v1394
    %v1591 = vpop.f32.mrb[0].mxu0
    %v1592 = vadd.f32 %v1443, %v1591
    %v1593 = vpop.f32.mrb[0].mxu0
    %v1594 = vpop.f32.mrb[0].mxu0
    %v1595 = vadd.f32 %v1443, %v1594
    %v1596 = vpop.f32.mrb[0].mxu0
    %1597 = vmatprep.mubr.bf16.mxu0 %v1397
    %1598 = vmatmul.mubr.bf16.gmra.mrb[0].mxu0 %v1396
    %v1599 = vpop.f32.mrb[0].mxu0
    %v1600 = vadd.f32 %v1443, %v1599
    %v1601 = vpop.f32.mrb[0].mxu0
    %v1602 = vpop.f32.mrb[0].mxu0
    %v1603 = vadd.f32 %v1443, %v1602
    %v1604 = vpop.f32.mrb[0].mxu0
    %1605 = vmatprep.mubr.bf16.mxu0 %v1399
    %1606 = vmatmul.mubr.bf16.gmra.mrb[0].mxu0 %v1398
    %v1607 = vpop.f32.mrb[0].mxu0
    %v1608 = vadd.f32 %v1443, %v1607
    %v1609 = vpop.f32.mrb[0].mxu0
    %v1610 = vpop.f32.mrb[0].mxu0
    %v1611 = vadd.f32 %v1443, %v1610
    %v1612 = vpop.f32.mrb[0].mxu0
    %1613 = vmatprep.mubr.bf16.mxu0 %v1401
    %1614 = vmatmul.mubr.bf16.gmra.mrb[0].mxu0 %v1400
    %v1615 = vpop.f32.mrb[0].mxu0
    %v1616 = vadd.f32 %v1443, %v1615
    %v1617 = vpop.f32.mrb[0].mxu0
    %v1618 = vpop.f32.mrb[0].mxu0
    %v1619 = vadd.f32 %v1443, %v1618
    %v1620 = vpop.f32.mrb[0].mxu0
    %1621 = vmatprep.mubr.bf16.mxu0 %v1403
    %1622 = vmatmul.mubr.bf16.gmra.mrb[0].mxu0 %v1402
    %v1623 = vpop.f32.mrb[0].mxu0
    %v1624 = vadd.f32 %v1443, %v1623
    %v1625 = vpop.f32.mrb[0].mxu0
    %v1626 = vpop.f32.mrb[0].mxu0
    %v1627 = vadd.f32 %v1443, %v1626
    %v1628 = vpop.f32.mrb[0].mxu0
    %1629 = vmatprep.mubr.bf16.mxu0 %v1405
    %1630 = vmatmul.mubr.bf16.gmra.mrb[0].mxu0 %v1404
    %v1631 = vpop.f32.mrb[0].mxu0
    %v1632 = vadd.f32 %v1443, %v1631
    %v1633 = vpop.f32.mrb[0].mxu0
    %v1634 = vpop.f32.mrb[0].mxu0
    %v1635 = vadd.f32 %v1443, %v1634
    %v1636 = vpop.f32.mrb[0].mxu0
    %1637 = vdwg.mxu0
    %v1638 = vmax.f32 %v1576, 0.0
    %v1639 = vmax.f32 %v1579, 0.0
    %v1640 = vmax.f32 %v1584, 0.0
    %v1641 = vmax.f32 %v1587, 0.0
    %v1642 = vmax.f32 %v1592, 0.0
    %v1643 = vmax.f32 %v1595, 0.0
    %v1644 = vmax.f32 %v1600, 0.0
    %v1645 = vmax.f32 %v1603, 0.0
    %v1646 = vmax.f32 %v1608, 0.0
    %v1647 = vmax.f32 %v1611, 0.0
    %v1648 = vmax.f32 %v1616, 0.0
    %v1649 = vmax.f32 %v1619, 0.0
    %v1650 = vmax.f32 %v1624, 0.0
    %v1651 = vmax.f32 %v1627, 0.0
    %v1652 = vmax.f32 %v1632, 0.0
    %v1653 = vmax.f32 %v1635, 0.0
    %v1654 = vpack.c.bf16 %v1639, %v1638
    %v1655 = vpack.c.bf16 %v1641, %v1640
    %v1656 = vpack.c.bf16 %v1643, %v1642
    %v1657 = vpack.c.bf16 %v1645, %v1644
    %v1658 = vpack.c.bf16 %v1647, %v1646
    %v1659 = vpack.c.bf16 %v1649, %v1648
    %v1660 = vpack.c.bf16 %v1651, %v1650
    %v1661 = vpack.c.bf16 %v1653, %v1652
    %v1662 = vld [vmem:[%s13] sm:$0xf]
    %v1663 = vld [vmem:[%s13 + $0x4] sm:$0xf]
    %v1664 = vld [vmem:[%s13 + $0x8] sm:$0xf]
    %v1665 = vld [vmem:[%s13 + $0xc] sm:$0xf]
    %v1666 = vld [vmem:[%s13 + $0x10] sm:$0xf]
    %v1667 = vld [vmem:[%s13 + $0x14] sm:$0xf]
    %v1668 = vld [vmem:[%s13 + $0x18] sm:$0xf]
    %v1669 = vld [vmem:[%s13 + $0x1c] sm:$0xf]
    %v1670 = vld [vmem:[%s13 + $0x20] sm:$0xf]
    %v1671 = vld [vmem:[%s13 + $0x24] sm:$0xf]
    %v1672 = vld [vmem:[%s13 + $0x28] sm:$0xf]
    %v1673 = vld [vmem:[%s13 + $0x2c] sm:$0xf]
    %v1674 = vld [vmem:[%s13 + $0x30] sm:$0xf]
    %v1675 = vld [vmem:[%s13 + $0x34] sm:$0xf]
    %v1676 = vld [vmem:[%s13 + $0x38] sm:$0xf]
    %v1677 = vld [vmem:[%s13 + $0x3c] sm:$0xf]
    %v1678 = vld [vmem:[#allocation20] sm:$0x1]
    %v1680 = vlaneseq
    %v1681 = vshrl.u32 %v1680, 7
    %v1682 = vsub.s32 0, %v1681
    %v1683 = vrot.slane %v1678, %v1682
    %v1701 = vunpack.c.l.b16 %v1662
    %v1702 = vunpack.c.l.b16 %v1663
    %v1703 = vunpack.c.l.b16 %v1664
    %v1704 = vunpack.c.l.b16 %v1665
    %v1705 = vunpack.c.l.b16 %v1666
    %v1706 = vunpack.c.l.b16 %v1667
    %v1707 = vunpack.c.l.b16 %v1668
    %v1708 = vunpack.c.l.b16 %v1669
    %v1709 = vunpack.c.l.b16 %v1670
    %v1710 = vunpack.c.l.b16 %v1671
    %v1711 = vunpack.c.l.b16 %v1672
    %v1712 = vunpack.c.l.b16 %v1673
    %v1713 = vunpack.c.l.b16 %v1674
    %v1714 = vunpack.c.l.b16 %v1675
    %v1715 = vunpack.c.l.b16 %v1676
    %v1716 = vunpack.c.l.b16 %v1677
    %v1717 = vpack.c.b16 %v1702, %v1701
    %v1718 = vpack.c.b16 %v1704, %v1703
    %v1719 = vpack.c.b16 %v1706, %v1705
    %v1720 = vpack.c.b16 %v1708, %v1707
    %v1721 = vpack.c.b16 %v1710, %v1709
    %v1722 = vpack.c.b16 %v1712, %v1711
    %v1723 = vpack.c.b16 %v1714, %v1713
    %v1724 = vpack.c.b16 %v1716, %v1715
    %1733 = vmatprep.subr.bf16.mxu0 0
    %1734 = vmatpush1.bf16.msra.mxu0 %v1717
    %1735 = vmatprep.subr.bf16.mxu0 0
    %1736 = vmatpush1.bf16.msra.mxu0 %v1718
    %1737 = vmatprep.subr.bf16.mxu0 0
    %1738 = vmatpush1.bf16.msra.mxu0 %v1719
    %1739 = vmatprep.subr.bf16.mxu0 0
    %1740 = vmatpush1.bf16.msra.mxu0 %v1720
    %1741 = vmatprep.subr.bf16.mxu0 0
    %1742 = vmatpush1.bf16.msra.mxu0 %v1721
    %1743 = vmatprep.subr.bf16.mxu0 0
    %1744 = vmatpush1.bf16.msra.mxu0 %v1722
    %1745 = vmatprep.subr.bf16.mxu0 0
    %1746 = vmatpush1.bf16.msra.mxu0 %v1723
    %1747 = vmatprep.subr.bf16.mxu0 0
    %1748 = vmatpush1.bf16.msra.mxu0 %v1724
    %1749 = vmatprep.subr.bf16.mxu0 0
    %1750 = vmatpush1.bf16.msra.mxu0 0
    %1751 = vmatprep.subr.bf16.mxu0 0
    %1752 = vmatpush1.bf16.msra.mxu0 0
    %1753 = vmatprep.subr.bf16.mxu0 0
    %1754 = vmatpush1.bf16.msra.mxu0 0
    %1755 = vmatprep.subr.bf16.mxu0 0
    %1756 = vmatpush1.bf16.msra.mxu0 0
    %1757 = vmatprep.subr.bf16.mxu0 0
    %1758 = vmatpush1.bf16.msra.mxu0 0
    %1759 = vmatprep.subr.bf16.mxu0 0
    %1760 = vmatpush1.bf16.msra.mxu0 0
    %1761 = vmatprep.subr.bf16.mxu0 0
    %1762 = vmatpush1.bf16.msra.mxu0 0
    %1763 = vmatprep.subr.bf16.mxu0 0
    %1764 = vmatpush1.bf16.msra.mxu0 0
    %1765 = vmatprep.mubr.bf16.mxu0 0
    %1766 = vmatmul.mubr.bf16.gmra.mrb[0].mxu0 %v1654
    %v1767 = vpop.f32.mrb[0].mxu0
    %v1768 = vadd.f32 %v1683, %v1767
    %v1769 = vpop.f32.mrb[0].mxu0
    %v1770 = vpop.f32.mrb[0].mxu0
    %v1771 = vadd.f32 %v1683, %v1770
    %v1772 = vpop.f32.mrb[0].mxu0
    %1773 = vmatprep.mubr.bf16.mxu0 0
    %1774 = vmatmul.mubr.bf16.gmra.mrb[0].mxu0 %v1655
    %v1775 = vpop.f32.mrb[0].mxu0
    %v1776 = vadd.f32 %v1683, %v1775
    %v1777 = vpop.f32.mrb[0].mxu0
    %v1778 = vpop.f32.mrb[0].mxu0
    %v1779 = vadd.f32 %v1683, %v1778
    %v1780 = vpop.f32.mrb[0].mxu0
    %1781 = vmatprep.mubr.bf16.mxu0 0
    %1782 = vmatmul.mubr.bf16.gmra.mrb[0].mxu0 %v1656
    %v1783 = vpop.f32.mrb[0].mxu0
    %v1784 = vadd.f32 %v1683, %v1783
    %v1785 = vpop.f32.mrb[0].mxu0
    %v1786 = vpop.f32.mrb[0].mxu0
    %v1787 = vadd.f32 %v1683, %v1786
    %v1788 = vpop.f32.mrb[0].mxu0
    %1789 = vmatprep.mubr.bf16.mxu0 0
    %1790 = vmatmul.mubr.bf16.gmra.mrb[0].mxu0 %v1657
    %v1791 = vpop.f32.mrb[0].mxu0
    %v1792 = vadd.f32 %v1683, %v1791
    %v1793 = vpop.f32.mrb[0].mxu0
    %v1794 = vpop.f32.mrb[0].mxu0
    %v1795 = vadd.f32 %v1683, %v1794
    %v1796 = vpop.f32.mrb[0].mxu0
    %1797 = vmatprep.mubr.bf16.mxu0 0
    %1798 = vmatmul.mubr.bf16.gmra.mrb[0].mxu0 %v1658
    %v1799 = vpop.f32.mrb[0].mxu0
    %v1800 = vadd.f32 %v1683, %v1799
    %v1801 = vpop.f32.mrb[0].mxu0
    %v1802 = vpop.f32.mrb[0].mxu0
    %v1803 = vadd.f32 %v1683, %v1802
    %v1804 = vpop.f32.mrb[0].mxu0
    %1805 = vmatprep.mubr.bf16.mxu0 0
    %1806 = vmatmul.mubr.bf16.gmra.mrb[0].mxu0 %v1659
    %v1807 = vpop.f32.mrb[0].mxu0
    %v1808 = vadd.f32 %v1683, %v1807
    %v1809 = vpop.f32.mrb[0].mxu0
    %v1810 = vpop.f32.mrb[0].mxu0
    %v1811 = vadd.f32 %v1683, %v1810
    %v1812 = vpop.f32.mrb[0].mxu0
    %1813 = vmatprep.mubr.bf16.mxu0 0
    %1814 = vmatmul.mubr.bf16.gmra.mrb[0].mxu0 %v1660
    %v1815 = vpop.f32.mrb[0].mxu0
    %v1816 = vadd.f32 %v1683, %v1815
    %v1817 = vpop.f32.mrb[0].mxu0
    %v1818 = vpop.f32.mrb[0].mxu0
    %v1819 = vadd.f32 %v1683, %v1818
    %v1820 = vpop.f32.mrb[0].mxu0
    %1821 = vmatprep.mubr.bf16.mxu0 0
    %1822 = vmatmul.mubr.bf16.gmra.mrb[0].mxu0 %v1661
    %v1823 = vpop.f32.mrb[0].mxu0
    %v1824 = vadd.f32 %v1683, %v1823
    %v1825 = vpop.f32.mrb[0].mxu0
    %v1826 = vpop.f32.mrb[0].mxu0
    %v1827 = vadd.f32 %v1683, %v1826
    %v1828 = vpop.f32.mrb[0].mxu0
    %1829 = vdwg.mxu0
    %v1830 = vmax.f32 %v1768, 0.0
    %v1831 = vmax.f32 %v1771, 0.0
    %v1832 = vmax.f32 %v1776, 0.0
    %v1833 = vmax.f32 %v1779, 0.0
    %v1834 = vmax.f32 %v1784, 0.0
    %v1835 = vmax.f32 %v1787, 0.0
    %v1836 = vmax.f32 %v1792, 0.0
    %v1837 = vmax.f32 %v1795, 0.0
    %v1838 = vmax.f32 %v1800, 0.0
    %v1839 = vmax.f32 %v1803, 0.0
    %v1840 = vmax.f32 %v1808, 0.0
    %v1841 = vmax.f32 %v1811, 0.0
    %v1842 = vmax.f32 %v1816, 0.0
    %v1843 = vmax.f32 %v1819, 0.0
    %v1844 = vmax.f32 %v1824, 0.0
    %v1845 = vmax.f32 %v1827, 0.0
    %v1846 = vpack.c.bf16 %v1831, %v1830
    %v1847 = vpack.c.bf16 %v1833, %v1832
    %v1848 = vpack.c.bf16 %v1835, %v1834
    %v1849 = vpack.c.bf16 %v1837, %v1836
    %v1850 = vpack.c.bf16 %v1839, %v1838
    %v1851 = vpack.c.bf16 %v1841, %v1840
    %v1852 = vpack.c.bf16 %v1843, %v1842
    %v1853 = vpack.c.bf16 %v1845, %v1844
    %v1854 = vld [vmem:[%s15] sm:$0xf]
    %v1855 = vld [vmem:[%s15 + $0x4] sm:$0xf]
    %v1856 = vld [vmem:[%s15 + $0x8] sm:$0xf]
    %v1857 = vld [vmem:[%s15 + $0xc] sm:$0xf]
    %v1858 = vld [vmem:[%s15 + $0x10] sm:$0xf]
    %v1859 = vld [vmem:[%s15 + $0x14] sm:$0xf]
    %v1860 = vld [vmem:[%s15 + $0x18] sm:$0xf]
    %v1861 = vld [vmem:[%s15 + $0x1c] sm:$0xf]
    %v1862 = vld [vmem:[%s16] sm:$0x1]
    %v1864 = vlaneseq
    %v1865 = vshrl.u32 %v1864, 7
    %v1866 = vsub.s32 0, %v1865
    %v1867 = vrot.slane %v1862, %v1866
    %v1877 = vunpack.c.l.b16 %v1854
    %v1878 = vunpack.c.l.b16 %v1855
    %v1879 = vunpack.c.l.b16 %v1856
    %v1880 = vunpack.c.l.b16 %v1857
    %v1881 = vunpack.c.l.b16 %v1858
    %v1882 = vunpack.c.l.b16 %v1859
    %v1883 = vunpack.c.l.b16 %v1860
    %v1884 = vunpack.c.l.b16 %v1861
    %v1885 = vpack.c.b16 %v1878, %v1877
    %v1886 = vpack.c.b16 %v1880, %v1879
    %v1887 = vpack.c.b16 %v1882, %v1881
    %v1888 = vpack.c.b16 %v1884, %v1883
    %v1894 = vsel %vm626, %v1846, 0
    %v1897 = vsel %vm626, %v1847, 0
    %v1900 = vsel %vm626, %v1848, 0
    %v1903 = vsel %vm626, %v1849, 0
    %v1906 = vsel %vm626, %v1850, 0
    %v1909 = vsel %vm626, %v1851, 0
    %v1912 = vsel %vm626, %v1852, 0
    %v1915 = vsel %vm626, %v1853, 0
    %1917 = vmatprep.subr.bf16.mxu0 0
    %1918 = vmatpush1.bf16.msra.mxu0 %v1885
    %1919 = vmatprep.subr.bf16.mxu0 0
    %1920 = vmatpush1.bf16.msra.mxu0 %v1886
    %1921 = vmatprep.subr.bf16.mxu0 0
    %1922 = vmatpush1.bf16.msra.mxu0 %v1887
    %1923 = vmatprep.subr.bf16.mxu0 0
    %1924 = vmatpush1.bf16.msra.mxu0 %v1888
    %1925 = vmatprep.subr.bf16.mxu0 0
    %1926 = vmatpush1.bf16.msra.mxu0 0
    %1927 = vmatprep.subr.bf16.mxu0 0
    %1928 = vmatpush1.bf16.msra.mxu0 0
    %1929 = vmatprep.subr.bf16.mxu0 0
    %1930 = vmatpush1.bf16.msra.mxu0 0
    %1931 = vmatprep.subr.bf16.mxu0 0
    %1932 = vmatpush1.bf16.msra.mxu0 0
    %1933 = vmatprep.subr.bf16.mxu0 0
    %1934 = vmatpush1.bf16.msra.mxu0 0
    %1935 = vmatprep.subr.bf16.mxu0 0
    %1936 = vmatpush1.bf16.msra.mxu0 0
    %1937 = vmatprep.subr.bf16.mxu0 0
    %1938 = vmatpush1.bf16.msra.mxu0 0
    %1939 = vmatprep.subr.bf16.mxu0 0
    %1940 = vmatpush1.bf16.msra.mxu0 0
    %1941 = vmatprep.subr.bf16.mxu0 0
    %1942 = vmatpush1.bf16.msra.mxu0 0
    %1943 = vmatprep.subr.bf16.mxu0 0
    %1944 = vmatpush1.bf16.msra.mxu0 0
    %1945 = vmatprep.subr.bf16.mxu0 0
    %1946 = vmatpush1.bf16.msra.mxu0 0
    %1947 = vmatprep.subr.bf16.mxu0 0
    %1948 = vmatpush1.bf16.msra.mxu0 0
    %1949 = vmatprep.mubr.bf16.mxu0 0
    %1950 = vmatmul.mubr.bf16.gmra.mrb[0].mxu0 %v1894
    %v1951 = vpop.f32.mrb[0].mxu0
    %v1952 = vadd.f32 %v1867, %v1951
    %v1953 = vpop.f32.mrb[0].mxu0
    %v1954 = vpop.f32.mrb[0].mxu0
    %v1955 = vadd.f32 %v1867, %v1954
    %v1956 = vpop.f32.mrb[0].mxu0
    %1957 = vmatprep.mubr.bf16.mxu0 0
    %1958 = vmatmul.mubr.bf16.gmra.mrb[0].mxu0 %v1897
    %v1959 = vpop.f32.mrb[0].mxu0
    %v1960 = vadd.f32 %v1867, %v1959
    %v1961 = vpop.f32.mrb[0].mxu0
    %v1962 = vpop.f32.mrb[0].mxu0
    %v1963 = vadd.f32 %v1867, %v1962
    %v1964 = vpop.f32.mrb[0].mxu0
    %1965 = vmatprep.mubr.bf16.mxu0 0
    %1966 = vmatmul.mubr.bf16.gmra.mrb[0].mxu0 %v1900
    %v1967 = vpop.f32.mrb[0].mxu0
    %v1968 = vadd.f32 %v1867, %v1967
    %v1969 = vpop.f32.mrb[0].mxu0
    %v1970 = vpop.f32.mrb[0].mxu0
    %v1971 = vadd.f32 %v1867, %v1970
    %v1972 = vpop.f32.mrb[0].mxu0
    %1973 = vmatprep.mubr.bf16.mxu0 0
    %1974 = vmatmul.mubr.bf16.gmra.mrb[0].mxu0 %v1903
    %v1975 = vpop.f32.mrb[0].mxu0
    %v1976 = vadd.f32 %v1867, %v1975
    %v1977 = vpop.f32.mrb[0].mxu0
    %v1978 = vpop.f32.mrb[0].mxu0
    %v1979 = vadd.f32 %v1867, %v1978
    %v1980 = vpop.f32.mrb[0].mxu0
    %1981 = vmatprep.mubr.bf16.mxu0 0
    %1982 = vmatmul.mubr.bf16.gmra.mrb[0].mxu0 %v1906
    %v1983 = vpop.f32.mrb[0].mxu0
    %v1984 = vadd.f32 %v1867, %v1983
    %v1985 = vpop.f32.mrb[0].mxu0
    %v1986 = vpop.f32.mrb[0].mxu0
    %v1987 = vadd.f32 %v1867, %v1986
    %v1988 = vpop.f32.mrb[0].mxu0
    %1989 = vmatprep.mubr.bf16.mxu0 0
    %1990 = vmatmul.mubr.bf16.gmra.mrb[0].mxu0 %v1909
    %v1991 = vpop.f32.mrb[0].mxu0
    %v1992 = vadd.f32 %v1867, %v1991
    %v1993 = vpop.f32.mrb[0].mxu0
    %v1994 = vpop.f32.mrb[0].mxu0
    %v1995 = vadd.f32 %v1867, %v1994
    %v1996 = vpop.f32.mrb[0].mxu0
    %1997 = vmatprep.mubr.bf16.mxu0 0
    %1998 = vmatmul.mubr.bf16.gmra.mrb[0].mxu0 %v1912
    %v1999 = vpop.f32.mrb[0].mxu0
    %v2000 = vadd.f32 %v1867, %v1999
    %v2001 = vpop.f32.mrb[0].mxu0
    %v2002 = vpop.f32.mrb[0].mxu0
    %v2003 = vadd.f32 %v1867, %v2002
    %v2004 = vpop.f32.mrb[0].mxu0
    %2005 = vmatprep.mubr.bf16.mxu0 0
    %2006 = vmatmul.mubr.bf16.gmra.mrb[0].mxu0 %v1915
    %v2007 = vpop.f32.mrb[0].mxu0
    %v2008 = vadd.f32 %v1867, %v2007
    %v2009 = vpop.f32.mrb[0].mxu0
    %v2010 = vpop.f32.mrb[0].mxu0
    %v2011 = vadd.f32 %v1867, %v2010
    %v2012 = vpop.f32.mrb[0].mxu0
    %2013 = vdwg.mxu0
    %v2014 = vmax.f32 %v1952, 0.0
    %v2015 = vmax.f32 %v1955, 0.0
    %v2016 = vmax.f32 %v1960, 0.0
    %v2017 = vmax.f32 %v1963, 0.0
    %v2018 = vmax.f32 %v1968, 0.0
    %v2019 = vmax.f32 %v1971, 0.0
    %v2020 = vmax.f32 %v1976, 0.0
    %v2021 = vmax.f32 %v1979, 0.0
    %v2022 = vmax.f32 %v1984, 0.0
    %v2023 = vmax.f32 %v1987, 0.0
    %v2024 = vmax.f32 %v1992, 0.0
    %v2025 = vmax.f32 %v1995, 0.0
    %v2026 = vmax.f32 %v2000, 0.0
    %v2027 = vmax.f32 %v2003, 0.0
    %v2028 = vmax.f32 %v2008, 0.0
    %v2029 = vmax.f32 %v2011, 0.0
    %v2030 = vpack.c.bf16 %v2015, %v2014
    %v2031 = vpack.c.bf16 %v2017, %v2016
    %v2032 = vpack.c.bf16 %v2019, %v2018
    %v2033 = vpack.c.bf16 %v2021, %v2020
    %v2034 = vpack.c.bf16 %v2023, %v2022
    %v2035 = vpack.c.bf16 %v2025, %v2024
    %v2036 = vpack.c.bf16 %v2027, %v2026
    %v2037 = vpack.c.bf16 %v2029, %v2028
    %v2038 = vld [vmem:[%s17] sm:$0x1]
    %v2039 = vld [vmem:[#allocation2] sm:$0x1]
    %2041 = vset.pattern.permute.xlu0 0
    %2042 = vperm.xlu0 %2041, %v2039
    %v2043 = vpop.permute.xlu0 %2042
    %v2045 = vlaneseq
    %v2046 = vshrl.u32 %v2045, 7
    %v2047 = vsub.s32 0, %v2046
    %v2048 = vrot.slane %v2043, %v2047
    %v2050 = vsel %vm441, %v2038, 0
    %v2053 = vsel %vm441, %v2030, 0
    %v2056 = vsel %vm441, %v2031, 0
    %v2059 = vsel %vm441, %v2032, 0
    %v2062 = vsel %vm441, %v2033, 0
    %v2065 = vsel %vm441, %v2034, 0
    %v2068 = vsel %vm441, %v2035, 0
    %v2071 = vsel %vm441, %v2036, 0
    %v2074 = vsel %vm441, %v2037, 0
    %2076 = vmatprep.subr.bf16.mxu0 0
    %2077 = vmatpush1.bf16.xpose.msra.mxu0 %v2053
    %2078 = vmatprep.subr.bf16.mxu0 0
    %2079 = vmatpush1.bf16.xpose.msra.mxu0 %v2056
    %2080 = vmatprep.subr.bf16.mxu0 0
    %2081 = vmatpush1.bf16.xpose.msra.mxu0 %v2059
    %2082 = vmatprep.subr.bf16.mxu0 0
    %2083 = vmatpush1.bf16.xpose.msra.mxu0 %v2062
    %2084 = vmatprep.subr.bf16.mxu0 0
    %2085 = vmatpush1.bf16.xpose.msra.mxu0 %v2065
    %2086 = vmatprep.subr.bf16.mxu0 0
    %2087 = vmatpush1.bf16.xpose.msra.mxu0 %v2068
    %2088 = vmatprep.subr.bf16.mxu0 0
    %2089 = vmatpush1.bf16.xpose.msra.mxu0 %v2071
    %2090 = vmatprep.subr.bf16.mxu0 0
    %2091 = vmatpush1.bf16.xpose.msra.mxu0 %v2074
    %2092 = vmatprep.subr.bf16.mxu0 0
    %2093 = vmatpush1.bf16.xpose.msra.mxu0 0
    %2094 = vmatprep.subr.bf16.mxu0 0
    %2095 = vmatpush1.bf16.xpose.msra.mxu0 0
    %2096 = vmatprep.subr.bf16.mxu0 0
    %2097 = vmatpush1.bf16.xpose.msra.mxu0 0
    %2098 = vmatprep.subr.bf16.mxu0 0
    %2099 = vmatpush1.bf16.xpose.msra.mxu0 0
    %2100 = vmatprep.subr.bf16.mxu0 0
    %2101 = vmatpush1.bf16.xpose.msra.mxu0 0
    %2102 = vmatprep.subr.bf16.mxu0 0
    %2103 = vmatpush1.bf16.xpose.msra.mxu0 0
    %2104 = vmatprep.subr.bf16.mxu0 0
    %2105 = vmatpush1.bf16.xpose.msra.mxu0 0
    %2106 = vmatprep.subr.bf16.mxu0 0
    %2107 = vmatpush1.bf16.xpose.msra.mxu0 0
    %2108 = vmatprep.mubr.bf16.mxu0 0
    %2109 = vmatmul.mubr.bf16.gmra.mrb[0].mxu0 %v2050
    %v2110 = vpop.f32.mrb[0].mxu0
    %v2111 = vadd.f32 %v2048, %v2110
    %v2112 = vpop.f32.mrb[0].mxu0
    %v2113 = vpop.f32.mrb[0].mxu0
    %v2114 = vpop.f32.mrb[0].mxu0
    %2115 = vdwg.mxu0
    %2116 = vst [vmem:[#allocation21] sm:$0x1] %v2111
    // Predicated region
    $region122: #{tpu_custom_call.1} parent=1 // pred_check
      _
    $region123: #{tpu_custom_call.1} parent=1 // pred_check_branch
      %2118 = sbr.rel (0) target = $region125
    $region124: #{tpu_custom_call.1} parent=1 // pred_region
      %s2120 = ssub.s32 16, 16
      %2121 = vsyncadd [#allocation5], %s2120
      %s2123 = sshll.u32 [#allocation21], 4
      %s2124 = int_to_ptr.vmem [resolvable:$true] %s2123
      %2126 = dma.vmem_to_hbm [thread:$0]  %s2124, 16, %s19, [#allocation5]
    $region125: #{tpu_custom_call.1} parent=1 // pred_fallthru
      _
    // Predicated region
    $region126: #{tpu_custom_call.1} parent=1 // pred_check
      _
    $region127: #{tpu_custom_call.1} parent=1 // pred_check_branch
      %2128 = sbr.rel (0) target = $region129
    $region128: #{tpu_custom_call.1} parent=1 // pred_region
      %2129 = dma.done [#allocation5], 16
    $region129: #{tpu_custom_call.1} parent=1 // pred_fallthru
      _
    %2130 = vsyncpa [#allocation4], 1
    %2131 = vsyncpa [#allocation7], 1
    %2132 = vsyncpa [#allocation10], 1
    %2133 = vsyncpa [#allocation13], 1
    %2134 = vsyncpa [#allocation16], 1
    %2135 = vsyncpa [#allocation19], 1
    %2136 = vsyncpa [#allocation5], 1

</llo_original>
